<compile_context>
chip_gen: v7x
topology: tpu7x:2x2x1
jax: 0.10.0
libtpu: 0.0.40
codegen_flags: <defaults>
</compile_context>

<pallas_src>
import functools

import jax
import jax.numpy as jnp
from jax.experimental import pallas as pl
from jax.experimental.pallas import tpu as pltpu


# ----------------------------- Pallas kernel ------------------------------ #

def _conv_block_kernel(x_ref, w_ref, b_ref, o_ref, *, ks, st, toh, ow, c):
    """Compute one (TOH*OW, O_pad) slab of conv + bias + ReLU.

    x_ref: (TIH, Wp, C)       bf16 padded input rows for this slab (incl. halo)
    w_ref: (ks, ks*C, O_pad)  bf16; w_ref[i, j*C + cc, o] = weight[o, cc, i, j]
    b_ref: (1, O_pad)         f32 bias (zero in padded channels)
    o_ref: (TOH*OW, O_pad)    f32 output slab for (n, t) fixed by the grid
    """
    m = toh * ow
    o_pad = o_ref.shape[-1]

    # Bias folded into the accumulator init; accumulate directly in the f32
    # VMEM output block to keep live register pressure bounded.
    o_ref[...] = jnp.broadcast_to(b_ref[...], (m, o_pad))

    for i in range(ks):                                   # kernel rows (unrolled)
        rows = pl.ds(i, toh, st) if st > 1 else pl.ds(i, toh)
        taps = []
        for j in range(ks):                               # kernel cols -> merged into K
            # TODO(synk): for st > 1, replace the sublane-strided column read
            # with a stride-phase-grouped layout to avoid strided vlds.
            cols = pl.ds(j, ow, st) if st > 1 else pl.ds(j, ow)
            taps.append(x_ref[rows, cols, :])             # (TOH, OW, C) bf16
        a_i = jnp.concatenate(taps, axis=-1).reshape(m, ks * c)   # (M, ks*C)
        o_ref[...] += jnp.dot(a_i, w_ref[i],              # (ks*C, O_pad) bf16
                              preferred_element_type=jnp.float32)

    o_ref[...] = jnp.maximum(o_ref[...], 0.0)             # fused ReLU


# ----------------------------- wrapper ------------------------------------ #

def conv2d_block_forward(x, weight, bias, *, ks, st, padding):
    """Conv2dBlock forward: ZeroPad2d(padding) -> Conv2d(ks, st, bias) -> ReLU.

    x:      (N, in_dim, H, W)        float32, NCHW
    weight: (out_dim, in_dim, ks, ks)
    bias:   (out_dim,)
    returns (N, out_dim, OH, OW)     float32, NCHW
    """
    N, C, H, W = x.shape
    O = weight.shape[0]
    Hp, Wp = H + 2 * padding, W + 2 * padding
    OH = (Hp - ks) // st + 1
    OW = (Wp - ks) // st + 1
    O_pad = ((O + 127) // 128) * 128                     # lane-dense output channels

    # --- tile-size selection: M = TOH*OW targeted at ~256, bounded VMEM ----
    row_bytes = Wp * C * 2                               # one bf16 padded input row
    toh = 1
    for d in range(1, OH + 1):
        if OH % d:
            continue
        tih_d = (d - 1) * st + ks
        if d * OW <= 256 and 2 * tih_d * row_bytes <= (16 << 20):
            toh = d
    num_t = OH // toh
    tih = (toh - 1) * st + ks                            # input rows per slab (with halo)
    m = toh * OW

    # --- NCHW -> NHWC, zero pad, overlapped (halo) row blocks --------------
    # TODO(synk): keep NHWC end-to-end in the network and fuse ZeroPad2d into
    # the block gather to remove these wrapper HBM passes entirely.
    xb = x.astype(jnp.bfloat16).transpose(0, 2, 3, 1)
    if padding > 0:
        xb = jnp.pad(xb, ((0, 0), (padding, padding), (padding, padding), (0, 0)))
    # Row block t covers padded rows [t*TOH*st, t*TOH*st + TIH).
    row_idx = jnp.arange(num_t)[:, None] * (toh * st) + jnp.arange(tih)[None, :]
    xblk = xb[:, row_idx]                                # (N, num_t, TIH, Wp, C)

    # --- weights: (O, C, ks, ks) -> (ks, ks*C, O_pad), bf16 ----------------
    w = weight.astype(jnp.bfloat16).transpose(2, 3, 1, 0).reshape(ks, ks * C, O)
    b = bias.astype(jnp.float32).reshape(1, O)
    if O_pad != O:
        w = jnp.pad(w, ((0, 0), (0, 0), (0, O_pad - O)))
        b = jnp.pad(b, ((0, 0), (0, O_pad - O)))

    # --- explicit scoped-VMEM budget (double-buffered blocks + slack) ------
    need = (2 * (tih * Wp * C * 2                        # input slab (x2 buffers)
                 + ks * ks * C * O_pad * 2               # resident weights
                 + O_pad * 4                             # resident bias
                 + m * O_pad * 4)                        # output slab (x2 buffers)
            + m * ks * C * 2 + m * O_pad * 4)            # in-kernel temporaries
    vmem_limit = max(32 << 20, min(2 * need, 64 << 20))

    kernel = functools.partial(_conv_block_kernel, ks=ks, st=st, toh=toh, ow=OW, c=C)

    out = pl.pallas_call(
        kernel,
        out_shape=jax.ShapeDtypeStruct((N, num_t, m, O_pad), jnp.float32),
        grid_spec=pltpu.PrefetchScalarGridSpec(
            num_scalar_prefetch=0,
            grid=(N, num_t),
            in_specs=[
                # Bounded halo row block, re-DMA'd (and prefetched) per step.
                pl.BlockSpec((None, None, tih, Wp, C),
                             lambda n, t: (n, t, 0, 0, 0)),
                # Full bf16 weight / f32 bias resident for the whole kernel.
                pl.BlockSpec((ks, ks * C, O_pad), lambda n, t: (0, 0, 0)),
                pl.BlockSpec((1, O_pad), lambda n, t: (0, 0)),
            ],
            out_specs=pl.BlockSpec((None, None, m, O_pad),
                                   lambda n, t: (n, t, 0, 0)),
        ),
        compiler_params=pltpu.CompilerParams(
            dimension_semantics=("parallel", "parallel"),
            vmem_limit_bytes=vmem_limit),
    )(xblk, w, b)

    y = out.reshape(N, OH, OW, O_pad)
    if O_pad != O:
        y = y[..., :O]                                   # drop channel padding
    # TODO(synk): keep NHWC through the network to avoid this final transpose.
    return y.transpose(0, 3, 1, 2)                       # NHWC -> NCHW (PyTorch layout)


# ----------------------------- demo / test --------------------------------- #

if __name__ == "__main__":
    # Small config consistent with Conv2dBlock defaults (zero pad, ReLU, bias).
    in_dim, out_dim = 4, 8
    ks, st, padding = 3, 1, 1

    key = jax.random.PRNGKey(0)
    kx, kw, kb = jax.random.split(key, 3)

    # Deterministic "init" mimicking nn.Conv2d shapes (synthetic values).
    fan_in = in_dim * ks * ks
    bound = 1.0 / (fan_in ** 0.5)
    weight = jax.random.uniform(kw, (out_dim, in_dim, ks, ks),
                                jnp.float32, -bound, bound)
    bias = jax.random.uniform(kb, (out_dim,), jnp.float32, -bound, bound)

    # Input: NCHW.
    x = jax.random.normal(kx, (2, in_dim, 16, 16), jnp.float32)

    fwd = jax.jit(functools.partial(conv2d_block_forward,
                                    ks=ks, st=st, padding=padding))
    y = fwd(x, weight, bias)
    jax.block_until_ready(y)
    assert y.shape == (2, out_dim, 16, 16), y.shape

    # Reference 1 (tight): same bf16 operand quantization, f32 accumulate.
    ref_bf16 = jax.lax.conv_general_dilated(
        x.astype(jnp.bfloat16), weight.astype(jnp.bfloat16),
        window_strides=(st, st),
        padding=[(padding, padding), (padding, padding)],
        dimension_numbers=("NCHW", "OIHW", "NCHW"),
        preferred_element_type=jnp.float32)
    ref_bf16 = jnp.maximum(ref_bf16 + bias[None, :, None, None], 0.0)
    err_tight = jnp.max(jnp.abs(y - ref_bf16))
    assert err_tight < 2e-3, err_tight

    # Reference 2 (loose): full-f32 module semantics; bf16 MXU inputs explain the gap.
    ref_f32 = jax.lax.conv_general_dilated(
        x, weight, window_strides=(st, st),
        padding=[(padding, padding), (padding, padding)],
        dimension_numbers=("NCHW", "OIHW", "NCHW"))
    ref_f32 = jnp.maximum(ref_f32 + bias[None, :, None, None], 0.0)
    err_loose = jnp.max(jnp.abs(y - ref_f32))
    assert err_loose < 5e-2, err_loose

    print("KERNEL_OK")
</pallas_src>

<mosaic_0001>
module attributes {stable_mosaic.version = 11 : i64} {
  func.func @_conv_block_kernel(%arg0: i32, %arg1: i32, %arg2: memref<1x1x18x18x4xbf16, #tpu.memory_space<vmem>>, %arg3: memref<3x12x128xbf16, #tpu.memory_space<vmem>>, %arg4: memref<1x128xf32, #tpu.memory_space<vmem>>, %arg5: memref<1x1x256x128xf32, #tpu.memory_space<vmem>>) attributes {dimension_semantics = [#tpu.dimension_semantics<parallel>, #tpu.dimension_semantics<parallel>], iteration_bounds = array<i64: 2, 1>, scalar_prefetch = 0 : i64, scratch_operands = 0 : i64, tpu.core_type = #tpu.core_type<tc>, window_params = [{transform_indices = @transform_0, window_bounds = array<i64: 1, 1, 18, 18, 4>}, {pipeline_mode = #tpu.pipeline_mode<synchronous>, transform_indices = @transform_1, window_bounds = array<i64: 3, 12, 128>}, {pipeline_mode = #tpu.pipeline_mode<synchronous>, transform_indices = @transform_2, window_bounds = array<i64: 1, 128>}, {transform_indices = @transform_3, window_bounds = array<i64: 1, 1, 256, 128>}]} {
    %c0 = arith.constant 0 : index
    %c0_0 = arith.constant 0 : index
    %0 = vector.load %arg4[%c0, %c0_0] : memref<1x128xf32, #tpu.memory_space<vmem>>, vector<1x128xf32>
    %1 = vector.shape_cast %0 : vector<1x128xf32> to vector<1x128xf32>
    %2 = vector.broadcast %1 : vector<1x128xf32> to vector<256x128xf32>
    %c0_1 = arith.constant 0 : index
    %c0_2 = arith.constant 0 : index
    %c0_3 = arith.constant 0 : index
    %c0_4 = arith.constant 0 : index
    %3 = vector.load %arg5[%c0_1, %c0_2, %c0_3, %c0_4] : memref<1x1x256x128xf32, #tpu.memory_space<vmem>>, vector<1x1x256x128xf32>
    %4 = vector.shape_cast %3 : vector<1x1x256x128xf32> to vector<256x128xf32>
    %5 = vector.shape_cast %2 : vector<256x128xf32> to vector<1x1x256x128xf32>
    tpu.vector_store %arg5[%c0_1, %c0_2, %c0_3, %c0_4], %5 {strides = array<i32>} : memref<1x1x256x128xf32, #tpu.memory_space<vmem>>, vector<1x1x256x128xf32>,
    %c0_5 = arith.constant 0 : index
    %c0_6 = arith.constant 0 : index
    %c0_7 = arith.constant 0 : index
    %c0_8 = arith.constant 0 : index
    %c0_9 = arith.constant 0 : index
    %6 = vector.load %arg2[%c0_5, %c0_6, %c0_7, %c0_8, %c0_9] : memref<1x1x18x18x4xbf16, #tpu.memory_space<vmem>>, vector<1x1x16x16x4xbf16>
    %7 = vector.shape_cast %6 : vector<1x1x16x16x4xbf16> to vector<16x16x4xbf16>
    %c0_10 = arith.constant 0 : index
    %c0_11 = arith.constant 0 : index
    %c0_12 = arith.constant 0 : index
    %c1 = arith.constant 1 : index
    %c0_13 = arith.constant 0 : index
    %8 = vector.load %arg2[%c0_10, %c0_11, %c0_12, %c1, %c0_13] : memref<1x1x18x18x4xbf16, #tpu.memory_space<vmem>>, vector<1x1x16x16x4xbf16>
    %9 = vector.shape_cast %8 : vector<1x1x16x16x4xbf16> to vector<16x16x4xbf16>
    %c0_14 = arith.constant 0 : index
    %c0_15 = arith.constant 0 : index
    %c0_16 = arith.constant 0 : index
    %c2 = arith.constant 2 : index
    %c0_17 = arith.constant 0 : index
    %10 = vector.load %arg2[%c0_14, %c0_15, %c0_16, %c2, %c0_17] : memref<1x1x18x18x4xbf16, #tpu.memory_space<vmem>>, vector<1x1x16x16x4xbf16>
    %11 = vector.shape_cast %10 : vector<1x1x16x16x4xbf16> to vector<16x16x4xbf16>
    %12 = tpu.concatenate %7, %9, %11 in 2 : vector<16x16x4xbf16>, vector<16x16x4xbf16>, vector<16x16x4xbf16> -> vector<16x16x12xbf16>
    %13 = vector.shape_cast %12 : vector<16x16x12xbf16> to vector<256x12xbf16>
    %c0_18 = arith.constant 0 : index
    %c0_19 = arith.constant 0 : index
    %c0_20 = arith.constant 0 : index
    %c0_21 = arith.constant 0 : index
    %14 = vector.load %arg5[%c0_18, %c0_19, %c0_20, %c0_21] : memref<1x1x256x128xf32, #tpu.memory_space<vmem>>, vector<1x1x256x128xf32>
    %15 = vector.shape_cast %14 : vector<1x1x256x128xf32> to vector<256x128xf32>
    %c0_22 = arith.constant 0 : index
    %c0_23 = arith.constant 0 : index
    %c0_24 = arith.constant 0 : index
    %16 = vector.load %arg3[%c0_22, %c0_23, %c0_24] : memref<3x12x128xbf16, #tpu.memory_space<vmem>>, vector<1x12x128xbf16>
    %17 = vector.shape_cast %16 : vector<1x12x128xbf16> to vector<12x128xbf16>
    %cst = arith.constant dense<0.000000e+00> : vector<256x128xf32>
    %18 = tpu.matmul %13, %17, %cst {dimension_numbers = #tpu.dot_dimension_numbers<[1], [0], [0], [1], [0, 0, 1, 1], [], []>} : vector<256x12xbf16>, vector<12x128xbf16>, vector<256x128xf32> -> vector<256x128xf32>
    %19 = arith.addf %15, %18 : vector<256x128xf32>
    %c0_25 = arith.constant 0 : index
    %c0_26 = arith.constant 0 : index
    %c0_27 = arith.constant 0 : index
    %c0_28 = arith.constant 0 : index
    %20 = vector.load %arg5[%c0_25, %c0_26, %c0_27, %c0_28] : memref<1x1x256x128xf32, #tpu.memory_space<vmem>>, vector<1x1x256x128xf32>
    %21 = vector.shape_cast %20 : vector<1x1x256x128xf32> to vector<256x128xf32>
    %22 = vector.shape_cast %19 : vector<256x128xf32> to vector<1x1x256x128xf32>
    tpu.vector_store %arg5[%c0_25, %c0_26, %c0_27, %c0_28], %22 {strides = array<i32>} : memref<1x1x256x128xf32, #tpu.memory_space<vmem>>, vector<1x1x256x128xf32>,
    %c0_29 = arith.constant 0 : index
    %c0_30 = arith.constant 0 : index
    %c1_31 = arith.constant 1 : index
    %c0_32 = arith.constant 0 : index
    %c0_33 = arith.constant 0 : index
    %23 = vector.load %arg2[%c0_29, %c0_30, %c1_31, %c0_32, %c0_33] : memref<1x1x18x18x4xbf16, #tpu.memory_space<vmem>>, vector<1x1x16x16x4xbf16>
    %24 = vector.shape_cast %23 : vector<1x1x16x16x4xbf16> to vector<16x16x4xbf16>
    %c0_34 = arith.constant 0 : index
    %c0_35 = arith.constant 0 : index
    %c1_36 = arith.constant 1 : index
    %c1_37 = arith.constant 1 : index
    %c0_38 = arith.constant 0 : index
    %25 = vector.load %arg2[%c0_34, %c0_35, %c1_36, %c1_37, %c0_38] : memref<1x1x18x18x4xbf16, #tpu.memory_space<vmem>>, vector<1x1x16x16x4xbf16>
    %26 = vector.shape_cast %25 : vector<1x1x16x16x4xbf16> to vector<16x16x4xbf16>
    %c0_39 = arith.constant 0 : index
    %c0_40 = arith.constant 0 : index
    %c1_41 = arith.constant 1 : index
    %c2_42 = arith.constant 2 : index
    %c0_43 = arith.constant 0 : index
    %27 = vector.load %arg2[%c0_39, %c0_40, %c1_41, %c2_42, %c0_43] : memref<1x1x18x18x4xbf16, #tpu.memory_space<vmem>>, vector<1x1x16x16x4xbf16>
    %28 = vector.shape_cast %27 : vector<1x1x16x16x4xbf16> to vector<16x16x4xbf16>
    %29 = tpu.concatenate %24, %26, %28 in 2 : vector<16x16x4xbf16>, vector<16x16x4xbf16>, vector<16x16x4xbf16> -> vector<16x16x12xbf16>
    %30 = vector.shape_cast %29 : vector<16x16x12xbf16> to vector<256x12xbf16>
    %c0_44 = arith.constant 0 : index
    %c0_45 = arith.constant 0 : index
    %c0_46 = arith.constant 0 : index
    %c0_47 = arith.constant 0 : index
    %31 = vector.load %arg5[%c0_44, %c0_45, %c0_46, %c0_47] : memref<1x1x256x128xf32, #tpu.memory_space<vmem>>, vector<1x1x256x128xf32>
    %32 = vector.shape_cast %31 : vector<1x1x256x128xf32> to vector<256x128xf32>
    %c1_48 = arith.constant 1 : index
    %c0_49 = arith.constant 0 : index
    %c0_50 = arith.constant 0 : index
    %33 = vector.load %arg3[%c1_48, %c0_49, %c0_50] : memref<3x12x128xbf16, #tpu.memory_space<vmem>>, vector<1x12x128xbf16>
    %34 = vector.shape_cast %33 : vector<1x12x128xbf16> to vector<12x128xbf16>
    %cst_51 = arith.constant dense<0.000000e+00> : vector<256x128xf32>
    %35 = tpu.matmul %30, %34, %cst_51 {dimension_numbers = #tpu.dot_dimension_numbers<[1], [0], [0], [1], [0, 0, 1, 1], [], []>} : vector<256x12xbf16>, vector<12x128xbf16>, vector<256x128xf32> -> vector<256x128xf32>
    %36 = arith.addf %32, %35 : vector<256x128xf32>
    %c0_52 = arith.constant 0 : index
    %c0_53 = arith.constant 0 : index
    %c0_54 = arith.constant 0 : index
    %c0_55 = arith.constant 0 : index
    %37 = vector.load %arg5[%c0_52, %c0_53, %c0_54, %c0_55] : memref<1x1x256x128xf32, #tpu.memory_space<vmem>>, vector<1x1x256x128xf32>
    %38 = vector.shape_cast %37 : vector<1x1x256x128xf32> to vector<256x128xf32>
    %39 = vector.shape_cast %36 : vector<256x128xf32> to vector<1x1x256x128xf32>
    tpu.vector_store %arg5[%c0_52, %c0_53, %c0_54, %c0_55], %39 {strides = array<i32>} : memref<1x1x256x128xf32, #tpu.memory_space<vmem>>, vector<1x1x256x128xf32>,
    %c0_56 = arith.constant 0 : index
    %c0_57 = arith.constant 0 : index
    %c2_58 = arith.constant 2 : index
    %c0_59 = arith.constant 0 : index
    %c0_60 = arith.constant 0 : index
    %40 = vector.load %arg2[%c0_56, %c0_57, %c2_58, %c0_59, %c0_60] : memref<1x1x18x18x4xbf16, #tpu.memory_space<vmem>>, vector<1x1x16x16x4xbf16>
    %41 = vector.shape_cast %40 : vector<1x1x16x16x4xbf16> to vector<16x16x4xbf16>
    %c0_61 = arith.constant 0 : index
    %c0_62 = arith.constant 0 : index
    %c2_63 = arith.constant 2 : index
    %c1_64 = arith.constant 1 : index
    %c0_65 = arith.constant 0 : index
    %42 = vector.load %arg2[%c0_61, %c0_62, %c2_63, %c1_64, %c0_65] : memref<1x1x18x18x4xbf16, #tpu.memory_space<vmem>>, vector<1x1x16x16x4xbf16>
    %43 = vector.shape_cast %42 : vector<1x1x16x16x4xbf16> to vector<16x16x4xbf16>
    %c0_66 = arith.constant 0 : index
    %c0_67 = arith.constant 0 : index
    %c2_68 = arith.constant 2 : index
    %c2_69 = arith.constant 2 : index
    %c0_70 = arith.constant 0 : index
    %44 = vector.load %arg2[%c0_66, %c0_67, %c2_68, %c2_69, %c0_70] : memref<1x1x18x18x4xbf16, #tpu.memory_space<vmem>>, vector<1x1x16x16x4xbf16>
    %45 = vector.shape_cast %44 : vector<1x1x16x16x4xbf16> to vector<16x16x4xbf16>
    %46 = tpu.concatenate %41, %43, %45 in 2 : vector<16x16x4xbf16>, vector<16x16x4xbf16>, vector<16x16x4xbf16> -> vector<16x16x12xbf16>
    %47 = vector.shape_cast %46 : vector<16x16x12xbf16> to vector<256x12xbf16>
    %c0_71 = arith.constant 0 : index
    %c0_72 = arith.constant 0 : index
    %c0_73 = arith.constant 0 : index
    %c0_74 = arith.constant 0 : index
    %48 = vector.load %arg5[%c0_71, %c0_72, %c0_73, %c0_74] : memref<1x1x256x128xf32, #tpu.memory_space<vmem>>, vector<1x1x256x128xf32>
    %49 = vector.shape_cast %48 : vector<1x1x256x128xf32> to vector<256x128xf32>
    %c2_75 = arith.constant 2 : index
    %c0_76 = arith.constant 0 : index
    %c0_77 = arith.constant 0 : index
    %50 = vector.load %arg3[%c2_75, %c0_76, %c0_77] : memref<3x12x128xbf16, #tpu.memory_space<vmem>>, vector<1x12x128xbf16>
    %51 = vector.shape_cast %50 : vector<1x12x128xbf16> to vector<12x128xbf16>
    %cst_78 = arith.constant dense<0.000000e+00> : vector<256x128xf32>
    %52 = tpu.matmul %47, %51, %cst_78 {dimension_numbers = #tpu.dot_dimension_numbers<[1], [0], [0], [1], [0, 0, 1, 1], [], []>} : vector<256x12xbf16>, vector<12x128xbf16>, vector<256x128xf32> -> vector<256x128xf32>
    %53 = arith.addf %49, %52 : vector<256x128xf32>
    %c0_79 = arith.constant 0 : index
    %c0_80 = arith.constant 0 : index
    %c0_81 = arith.constant 0 : index
    %c0_82 = arith.constant 0 : index
    %54 = vector.load %arg5[%c0_79, %c0_80, %c0_81, %c0_82] : memref<1x1x256x128xf32, #tpu.memory_space<vmem>>, vector<1x1x256x128xf32>
    %55 = vector.shape_cast %54 : vector<1x1x256x128xf32> to vector<256x128xf32>
    %56 = vector.shape_cast %53 : vector<256x128xf32> to vector<1x1x256x128xf32>
    tpu.vector_store %arg5[%c0_79, %c0_80, %c0_81, %c0_82], %56 {strides = array<i32>} : memref<1x1x256x128xf32, #tpu.memory_space<vmem>>, vector<1x1x256x128xf32>,
    %c0_83 = arith.constant 0 : index
    %c0_84 = arith.constant 0 : index
    %c0_85 = arith.constant 0 : index
    %c0_86 = arith.constant 0 : index
    %57 = vector.load %arg5[%c0_83, %c0_84, %c0_85, %c0_86] : memref<1x1x256x128xf32, #tpu.memory_space<vmem>>, vector<1x1x256x128xf32>
    %58 = vector.shape_cast %57 : vector<1x1x256x128xf32> to vector<256x128xf32>
    %cst_87 = arith.constant 0.000000e+00 : f32
    %59 = vector.broadcast %cst_87 : f32 to vector<256x128xf32>
    %60 = arith.maximumf %58, %59 : vector<256x128xf32>
    %c0_88 = arith.constant 0 : index
    %c0_89 = arith.constant 0 : index
    %c0_90 = arith.constant 0 : index
    %c0_91 = arith.constant 0 : index
    %61 = vector.load %arg5[%c0_88, %c0_89, %c0_90, %c0_91] : memref<1x1x256x128xf32, #tpu.memory_space<vmem>>, vector<1x1x256x128xf32>
    %62 = vector.shape_cast %61 : vector<1x1x256x128xf32> to vector<256x128xf32>
    %63 = vector.shape_cast %60 : vector<256x128xf32> to vector<1x1x256x128xf32>
    tpu.vector_store %arg5[%c0_88, %c0_89, %c0_90, %c0_91], %63 {strides = array<i32>} : memref<1x1x256x128xf32, #tpu.memory_space<vmem>>, vector<1x1x256x128xf32>,
    return
  }
  func.func @transform_0(%arg0: i32, %arg1: i32) -> (i32, i32, i32, i32, i32) {
    %c0_i32 = arith.constant 0 : i32
    %c0_i32_0 = arith.constant 0 : i32
    %c0_i32_1 = arith.constant 0 : i32
    %c0_i32_2 = arith.constant 0 : i32
    return %arg0, %arg1, %c0_i32, %c0_i32_0, %c0_i32_1 : i32, i32, i32, i32, i32
  }
  func.func @transform_1(%arg0: i32, %arg1: i32) -> (i32, i32, i32) {
    %c0_i32 = arith.constant 0 : i32
    %c0_i32_0 = arith.constant 0 : i32
    %c0_i32_1 = arith.constant 0 : i32
    %c0_i32_2 = arith.constant 0 : i32
    return %c0_i32, %c0_i32_0, %c0_i32_1 : i32, i32, i32
  }
  func.func @transform_2(%arg0: i32, %arg1: i32) -> (i32, i32) {
    %c0_i32 = arith.constant 0 : i32
    %c0_i32_0 = arith.constant 0 : i32
    %c0_i32_1 = arith.constant 0 : i32
    return %c0_i32, %c0_i32_0 : i32, i32
  }
  func.func @transform_3(%arg0: i32, %arg1: i32) -> (i32, i32, i32, i32) {
    %c0_i32 = arith.constant 0 : i32
    %c0_i32_0 = arith.constant 0 : i32
    %c0_i32_1 = arith.constant 0 : i32
    return %arg0, %arg1, %c0_i32, %c0_i32_0 : i32, i32, i32, i32
  }
}

</mosaic_0001>

<llo_original>
// kernel: conv2d_block_forward.1
$region0: #{conv2d_block_forward.1}
  #allocation0 [shape = 'u32[]', space=smem, size = 0x4, offset = 0x4, fixed_abs, tag = 'smem constant byte address 0x4 - core index']
  #allocation1 [shape = 'u32[144,128]{1,0:T(1,128)}', space=vmem, size = 0x12000, scoped, tag = 'internal scratch']
  %s0 = inlined_call_operand.vmem [shape: bf16[2,1,18,18,4], index: 0, kind: input, shape index: {}]
  %s1 = inlined_call_operand.vmem [shape: bf16[3,12,128], index: 1, kind: input, shape index: {}]
  %s2 = inlined_call_operand.vmem [shape: f32[1,128], index: 2, kind: input, shape index: {}]
  %s3 = inlined_call_operand.vmem [shape: f32[2,1,256,128], index: 3, kind: output, shape index: {}]
  %s4 = sld [smem:[#allocation0]]
  $region45: #{conv2d_block_forward.1} parent=0
    _
  %s6 = ssub.s32 1, %s4
  %s7 = scalar_select 0, %s6, %s4
  loop: start=0, step=1, limit=4
  $region2: #{conv2d_block_forward.1} parent=0 // loop_pre_header
    _
  $region3: #{conv2d_block_forward.1} parent=0 // loop_header
    %s9 = sphi 0, %s13
    %p10 = scmp.ge.s32.totalorder %s9, 4
    %s16 = sphi 0, %s28
    %s17 = sphi 0, %s24
    %s18 = sphi 0, %s16
    %s19 = sphi 0, %s17
    %s20 = sphi 0, %s18
    %s21 = sphi 0, %s19
    %s33 = sphi 0, %s35
    %s36 = sphi 0, %s33
    %s37 = sphi 0, %s36
    %s53 = sphi 0, %s37
    %s57 = sphi 0, %s57
    %s59 = sphi 0, %s57
    %s60 = sphi 0, %s59
    %s74 = sphi 0, %s60
    %s78 = sphi 0, %s78
    %s80 = sphi 0, %s78
    %s81 = sphi 0, %s80
    %s95 = sphi 0, %s81
    %s103 = sphi 0, %s105
    %s106 = sphi 0, %s103
    %s107 = sphi 0, %s106
    %s123 = sphi 0, %s107
  $region4: #{conv2d_block_forward.1} parent=0 // loop_header_branch
    %12 = sbr.rel (%p10) target = $region8
  $region5: #{conv2d_block_forward.1} parent=0 // loop_body
    %s14 = ssub.s32 %s9, 1
    %s15 = ssub.s32 %s9, 2
    %s22 = sadd.s32 1, %s17
    %p23 = scmp.ge.s32.totalorder %s22, 1
    %s24 = scalar_select %p23, 0, %s22
    %s25 = sadd.s32 1, %s16
    %s26 = scalar_select %p23, %s25, %s16
    %p27 = scmp.ge.s32.totalorder %s26, 2
    %s28 = scalar_select %p27, 0, %s26
    %s29 = ssub.s32 %s16, %s28
    %s30 = ssub.s32 %s17, %s24
    %s31 = sor.u32 %s29, %s30
    %p32 = scmp.eq.s32.totalorder %s31, 0
    %s34 = sadd.s32 %s33, 1
    %s35 = scalar_select %p32, %s33, %s34
    %p38 = pneg %p32
    %p39 = scmp.eq.s32.totalorder %s9, 1
    %p40 = por %p38, %p39
    %p41 = scmp.ne.s32.totalorder %s33, %s36
    %p42 = scmp.eq.s32.totalorder %s9, 0
    %p43 = por %p41, %p42
    %p44 = scmp.ne.s32.totalorder %s33, %s36
    %p45 = scmp.eq.s32.totalorder %s14, 1
    %p46 = por %p44, %p45
    %p47 = scmp.ne.s32.totalorder %s36, %s37
    %p48 = scmp.eq.s32.totalorder %s14, 0
    %p49 = por %p47, %p48
    %p50 = scmp.ne.s32.totalorder %s36, %s37
    %p51 = scmp.eq.s32.totalorder %s15, 1
    %p52 = por %p50, %p51
    %p54 = scmp.ne.s32.totalorder %s37, %s53
    %p55 = scmp.eq.s32.totalorder %s15, 0
    %p56 = por %p54, %p55
    %s58 = sadd.s32 %s57, 1
    %p61 = scmp.eq.s32.totalorder %s9, 1
    %p62 = scmp.ne.s32.totalorder %s57, %s59
    %p63 = scmp.eq.s32.totalorder %s9, 0
    %p64 = por %p62, %p63
    %p65 = scmp.ne.s32.totalorder %s57, %s59
    %p66 = scmp.eq.s32.totalorder %s14, 1
    %p67 = por %p65, %p66
    %p68 = scmp.ne.s32.totalorder %s59, %s60
    %p69 = scmp.eq.s32.totalorder %s14, 0
    %p70 = por %p68, %p69
    %p71 = scmp.ne.s32.totalorder %s59, %s60
    %p72 = scmp.eq.s32.totalorder %s15, 1
    %p73 = por %p71, %p72
    %p75 = scmp.ne.s32.totalorder %s60, %s74
    %p76 = scmp.eq.s32.totalorder %s15, 0
    %p77 = por %p75, %p76
    %s79 = sadd.s32 %s78, 1
    %p82 = scmp.eq.s32.totalorder %s9, 1
    %p83 = scmp.ne.s32.totalorder %s78, %s80
    %p84 = scmp.eq.s32.totalorder %s9, 0
    %p85 = por %p83, %p84
    %p86 = scmp.ne.s32.totalorder %s78, %s80
    %p87 = scmp.eq.s32.totalorder %s14, 1
    %p88 = por %p86, %p87
    %p89 = scmp.ne.s32.totalorder %s80, %s81
    %p90 = scmp.eq.s32.totalorder %s14, 0
    %p91 = por %p89, %p90
    %p92 = scmp.ne.s32.totalorder %s80, %s81
    %p93 = scmp.eq.s32.totalorder %s15, 1
    %p94 = por %p92, %p93
    %p96 = scmp.ne.s32.totalorder %s81, %s95
    %p97 = scmp.eq.s32.totalorder %s15, 0
    %p98 = por %p96, %p97
    %s99 = ssub.s32 %s16, %s28
    %s100 = ssub.s32 %s17, %s24
    %s101 = sor.u32 %s99, %s100
    %p102 = scmp.eq.s32.totalorder %s101, 0
    %s104 = sadd.s32 %s103, 1
    %s105 = scalar_select %p102, %s103, %s104
    %p108 = pneg %p102
    %p109 = scmp.eq.s32.totalorder %s9, 1
    %p110 = por %p108, %p109
    %p111 = scmp.ne.s32.totalorder %s103, %s106
    %p112 = scmp.eq.s32.totalorder %s9, 0
    %p113 = por %p111, %p112
    %p114 = scmp.ne.s32.totalorder %s103, %s106
    %p115 = scmp.eq.s32.totalorder %s14, 1
    %p116 = por %p114, %p115
    %p117 = scmp.ne.s32.totalorder %s106, %s107
    %p118 = scmp.eq.s32.totalorder %s14, 0
    %p119 = por %p117, %p118
    %p120 = scmp.ne.s32.totalorder %s106, %s107
    %p121 = scmp.eq.s32.totalorder %s15, 1
    %p122 = por %p120, %p121
    %p124 = scmp.ne.s32.totalorder %s107, %s123
    %p125 = scmp.eq.s32.totalorder %s15, 0
    %p126 = por %p124, %p125
    %p127 = scmp.le.s32.totalorder 1, %s9
    %p128 = scmp.lt.s32.totalorder %s9, 3
    %p129 = pnand %p127, %p128
    %p130 = pneg %p129
    // Predicated region
    $region9: #{conv2d_block_forward.1} parent=5 // pred_check
      _
    $region10: #{conv2d_block_forward.1} parent=5 // pred_check_branch
      %132 = sbr.rel (%p129) target = $region12
    $region11: #{conv2d_block_forward.1} parent=5 // pred_region
      %s133 = ssub.s32 %s9, 1
      // Predicated region
      $region13: #{conv2d_block_forward.1} parent=11 // pred_check
        %p134 = pneg %p70
      $region14: #{conv2d_block_forward.1} parent=11 // pred_check_branch
        %136 = sbr.rel (%p134) target = $region16
      $region15: #{conv2d_block_forward.1} parent=11 // pred_region
        _
      $region16: #{conv2d_block_forward.1} parent=11 // pred_fallthru
        _
      // Predicated region
      $region17: #{conv2d_block_forward.1} parent=11 // pred_check
        %p137 = pneg %p91
      $region18: #{conv2d_block_forward.1} parent=11 // pred_check_branch
        %139 = sbr.rel (%p137) target = $region20
      $region19: #{conv2d_block_forward.1} parent=11 // pred_region
        _
      $region20: #{conv2d_block_forward.1} parent=11 // pred_fallthru
        _
    $region12: #{conv2d_block_forward.1} parent=5 // pred_fallthru
      _
    %p140 = scmp.lt.s32.totalorder %s9, 2
    // Predicated region
    $region21: #{conv2d_block_forward.1} parent=5 // pred_check
      %p141 = pneg %p140
    $region22: #{conv2d_block_forward.1} parent=5 // pred_check_branch
      %143 = sbr.rel (%p141) target = $region24
    $region23: #{conv2d_block_forward.1} parent=5 // pred_region
      // Predicated region
      $region25: #{conv2d_block_forward.1} parent=23 // pred_check
        %p144 = pneg %p43
      $region26: #{conv2d_block_forward.1} parent=23 // pred_check_branch
        %146 = sbr.rel (%p144) target = $region28
      $region27: #{conv2d_block_forward.1} parent=23 // pred_region
        %p147 = scmp.lt.s32.totalorder %s16, 1
        %s148 = scalar_select %p147, %s16, 1
        %p149 = scmp.lt.s32.totalorder %s17, 0
        %s150 = scalar_select %p149, %s17, 0
        %s151 = smul.addr %s150, 54
        %s152 = smul.addr %s148, 54
        %s153 = sadd.s32 %s151, %s152
        %s154 = smul.addr %s153, 4
        %s155 = scalar_lea.vmem %s0, %s154
      $region28: #{conv2d_block_forward.1} parent=23 // pred_fallthru
        _
    $region24: #{conv2d_block_forward.1} parent=5 // pred_fallthru
      _
    %p156 = scmp.le.s32.totalorder 1, %s9
    %p157 = scmp.lt.s32.totalorder %s9, 3
    %p158 = pnand %p156, %p157
    %p159 = pneg %p158
    // Predicated region
    $region29: #{conv2d_block_forward.1} parent=5 // pred_check
      _
    $region30: #{conv2d_block_forward.1} parent=5 // pred_check_branch
      %161 = sbr.rel (%p158) target = $region32
    $region31: #{conv2d_block_forward.1} parent=5 // pred_region
      %s162 = ssub.s32 %s9, 1
      %p163 = scmp.lt.s32.totalorder %s18, 1
      %s164 = scalar_select %p163, %s18, 1
      %p165 = scmp.lt.s32.totalorder %s19, 0
      %s166 = scalar_select %p165, %s19, 0
      %s167 = smul.addr %s166, 54
      %s168 = smul.addr %s164, 54
      %s169 = sadd.s32 %s167, %s168
      %s170 = smul.addr %s169, 4
      %s171 = scalar_lea.vmem %s0, %s170
      %p172 = pneg %p49
      %p173 = pneg %p46
      %p174 = pneg %p70
      %p175 = pneg %p67
      %p176 = pneg %p91
      %p177 = pneg %p88
      %p178 = pneg %p119
      %p179 = pneg %p116
      %p180 = scmp.lt.s32.totalorder %s18, 1
      %s181 = scalar_select %p180, %s18, 1
      %p182 = scmp.lt.s32.totalorder %s19, 0
      %s183 = scalar_select %p182, %s19, 0
      %s184 = smul.addr %s183, 32
      %s185 = smul.addr %s181, 32
      %s186 = sadd.s32 %s184, %s185
      %s187 = smul.addr %s186, 8
      %s188 = scalar_lea.vmem %s3, %s187
      %p189 = scmp.lt.s32.totalorder %s18, 1
      %s190 = scalar_select %p189, %s18, 1
      %p191 = scmp.lt.s32.totalorder %s19, 0
      %s192 = scalar_select %p191, %s19, 0
      %s193 = smul.addr %s192, 54
      %s194 = smul.addr %s190, 54
      %s195 = sadd.s32 %s193, %s194
      %s196 = smul.addr %s195, 4
      %s197 = scalar_lea.vmem %s0, %s196
      %p198 = scmp.lt.s32.totalorder %s18, 1
      %s199 = scalar_select %p198, %s18, 1
      %p200 = scmp.lt.s32.totalorder %s19, 0
      %s201 = scalar_select %p200, %s19, 0
      %s202 = smul.addr %s201, 32
      %s203 = smul.addr %s199, 32
      %s204 = sadd.s32 %s202, %s203
      %s205 = smul.addr %s204, 8
      %s206 = scalar_lea.vmem %s3, %s205
      %v208 = vld [vmem:[%s2] sm:$0x1]
      %v210 = vlaneseq
      %v211 = vshrl.u32 %v210, 7
      %v212 = vsub.s32 0, %v211
      %v213 = vrot.slane %v208, %v212
      %215 = vst [vmem:[%s206] sm:$0xff] %v213
      %216 = vst [vmem:[%s206 + $0x8] sm:$0xff] %v213
      %217 = vst [vmem:[%s206 + $0x10] sm:$0xff] %v213
      %218 = vst [vmem:[%s206 + $0x18] sm:$0xff] %v213
      %219 = vst [vmem:[%s206 + $0x20] sm:$0xff] %v213
      %220 = vst [vmem:[%s206 + $0x28] sm:$0xff] %v213
      %221 = vst [vmem:[%s206 + $0x30] sm:$0xff] %v213
      %222 = vst [vmem:[%s206 + $0x38] sm:$0xff] %v213
      %223 = vst [vmem:[%s206 + $0x40] sm:$0xff] %v213
      %224 = vst [vmem:[%s206 + $0x48] sm:$0xff] %v213
      %225 = vst [vmem:[%s206 + $0x50] sm:$0xff] %v213
      %226 = vst [vmem:[%s206 + $0x58] sm:$0xff] %v213
      %227 = vst [vmem:[%s206 + $0x60] sm:$0xff] %v213
      %228 = vst [vmem:[%s206 + $0x68] sm:$0xff] %v213
      %229 = vst [vmem:[%s206 + $0x70] sm:$0xff] %v213
      %230 = vst [vmem:[%s206 + $0x78] sm:$0xff] %v213
      %231 = vst [vmem:[%s206 + $0x80] sm:$0xff] %v213
      %232 = vst [vmem:[%s206 + $0x88] sm:$0xff] %v213
      %233 = vst [vmem:[%s206 + $0x90] sm:$0xff] %v213
      %234 = vst [vmem:[%s206 + $0x98] sm:$0xff] %v213
      %235 = vst [vmem:[%s206 + $0xa0] sm:$0xff] %v213
      %236 = vst [vmem:[%s206 + $0xa8] sm:$0xff] %v213
      %237 = vst [vmem:[%s206 + $0xb0] sm:$0xff] %v213
      %238 = vst [vmem:[%s206 + $0xb8] sm:$0xff] %v213
      %239 = vst [vmem:[%s206 + $0xc0] sm:$0xff] %v213
      %240 = vst [vmem:[%s206 + $0xc8] sm:$0xff] %v213
      %241 = vst [vmem:[%s206 + $0xd0] sm:$0xff] %v213
      %242 = vst [vmem:[%s206 + $0xd8] sm:$0xff] %v213
      %243 = vst [vmem:[%s206 + $0xe0] sm:$0xff] %v213
      %244 = vst [vmem:[%s206 + $0xe8] sm:$0xff] %v213
      %245 = vst [vmem:[%s206 + $0xf0] sm:$0xff] %v213
      %246 = vst [vmem:[%s206 + $0xf8] sm:$0xff] %v213
      %v247 = vld [vmem:[%s197] sm:$0xf]
      %v248 = vld [vmem:[%s197 + $0x4] sm:$0xf]
      %v249 = vld [vmem:[%s197 + $0xc] sm:$0xf]
      %v250 = vld [vmem:[%s197 + $0x10] sm:$0xf]
      %v251 = vld [vmem:[%s197 + $0x18] sm:$0xf]
      %v252 = vld [vmem:[%s197 + $0x1c] sm:$0xf]
      %v253 = vld [vmem:[%s197 + $0x24] sm:$0xf]
      %v254 = vld [vmem:[%s197 + $0x28] sm:$0xf]
      %v255 = vld [vmem:[%s197 + $0x30] sm:$0xf]
      %v256 = vld [vmem:[%s197 + $0x34] sm:$0xf]
      %v257 = vld [vmem:[%s197 + $0x3c] sm:$0xf]
      %v258 = vld [vmem:[%s197 + $0x40] sm:$0xf]
      %v259 = vld [vmem:[%s197 + $0x48] sm:$0xf]
      %v260 = vld [vmem:[%s197 + $0x4c] sm:$0xf]
      %v261 = vld [vmem:[%s197 + $0x54] sm:$0xf]
      %v262 = vld [vmem:[%s197 + $0x58] sm:$0xf]
      %v263 = vld [vmem:[%s197 + $0x60] sm:$0xf]
      %v264 = vld [vmem:[%s197 + $0x64] sm:$0xf]
      %v265 = vld [vmem:[%s197 + $0x6c] sm:$0xf]
      %v266 = vld [vmem:[%s197 + $0x70] sm:$0xf]
      %v267 = vld [vmem:[%s197 + $0x78] sm:$0xf]
      %v268 = vld [vmem:[%s197 + $0x7c] sm:$0xf]
      %v269 = vld [vmem:[%s197 + $0x84] sm:$0xf]
      %v270 = vld [vmem:[%s197 + $0x88] sm:$0xf]
      %v271 = vld [vmem:[%s197 + $0x90] sm:$0xf]
      %v272 = vld [vmem:[%s197 + $0x94] sm:$0xf]
      %v273 = vld [vmem:[%s197 + $0x9c] sm:$0xf]
      %v274 = vld [vmem:[%s197 + $0xa0] sm:$0xf]
      %v275 = vld [vmem:[%s197 + $0xa8] sm:$0xf]
      %v276 = vld [vmem:[%s197 + $0xac] sm:$0xf]
      %v277 = vld [vmem:[%s197 + $0xb4] sm:$0xf]
      %v278 = vld [vmem:[%s197 + $0xb8] sm:$0xf]
      %v279 = vld [vmem:[%s197 + $0x8] sm:$0x1]
      %v280 = vld [vmem:[%s197 + $0x14] sm:$0x1]
      %v281 = vld [vmem:[%s197 + $0x20] sm:$0x1]
      %v282 = vld [vmem:[%s197 + $0x2c] sm:$0x1]
      %v283 = vld [vmem:[%s197 + $0x38] sm:$0x1]
      %v284 = vld [vmem:[%s197 + $0x44] sm:$0x1]
      %v285 = vld [vmem:[%s197 + $0x50] sm:$0x1]
      %v286 = vld [vmem:[%s197 + $0x5c] sm:$0x1]
      %v287 = vld [vmem:[%s197 + $0x68] sm:$0x1]
      %v288 = vld [vmem:[%s197 + $0x74] sm:$0x1]
      %v289 = vld [vmem:[%s197 + $0x80] sm:$0x1]
      %v290 = vld [vmem:[%s197 + $0x8c] sm:$0x1]
      %v291 = vld [vmem:[%s197 + $0x98] sm:$0x1]
      %v292 = vld [vmem:[%s197 + $0xa4] sm:$0x1]
      %v293 = vld [vmem:[%s197 + $0xb0] sm:$0x1]
      %v294 = vld [vmem:[%s197 + $0xbc] sm:$0x1]
      %v295 = vld [vmem:[%s197] sm:$0xe]
      %v296 = vld [vmem:[%s197 + $0xc] sm:$0xe]
      %v297 = vld [vmem:[%s197 + $0x18] sm:$0xe]
      %v298 = vld [vmem:[%s197 + $0x24] sm:$0xe]
      %v299 = vld [vmem:[%s197 + $0x30] sm:$0xe]
      %v300 = vld [vmem:[%s197 + $0x3c] sm:$0xe]
      %v301 = vld [vmem:[%s197 + $0x48] sm:$0xe]
      %v302 = vld [vmem:[%s197 + $0x54] sm:$0xe]
      %v303 = vld [vmem:[%s197 + $0x60] sm:$0xe]
      %v304 = vld [vmem:[%s197 + $0x6c] sm:$0xe]
      %v305 = vld [vmem:[%s197 + $0x78] sm:$0xe]
      %v306 = vld [vmem:[%s197 + $0x84] sm:$0xe]
      %v307 = vld [vmem:[%s197 + $0x90] sm:$0xe]
      %v308 = vld [vmem:[%s197 + $0x9c] sm:$0xe]
      %v309 = vld [vmem:[%s197 + $0xa8] sm:$0xe]
      %v310 = vld [vmem:[%s197 + $0xb4] sm:$0xe]
      %v343 = vunpack.c.l.b16 %v247
      %v344 = vunpack.c.l.b16 %v248
      %v345 = vunpack.c.l.b16 %v249
      %v346 = vunpack.c.l.b16 %v250
      %v347 = vunpack.c.l.b16 %v251
      %v348 = vunpack.c.l.b16 %v252
      %v349 = vunpack.c.l.b16 %v253
      %v350 = vunpack.c.l.b16 %v254
      %v351 = vunpack.c.l.b16 %v255
      %v352 = vunpack.c.l.b16 %v256
      %v353 = vunpack.c.l.b16 %v257
      %v354 = vunpack.c.l.b16 %v258
      %v355 = vunpack.c.l.b16 %v259
      %v356 = vunpack.c.l.b16 %v260
      %v357 = vunpack.c.l.b16 %v261
      %v358 = vunpack.c.l.b16 %v262
      %v359 = vunpack.c.l.b16 %v263
      %v360 = vunpack.c.l.b16 %v264
      %v361 = vunpack.c.l.b16 %v265
      %v362 = vunpack.c.l.b16 %v266
      %v363 = vunpack.c.l.b16 %v267
      %v364 = vunpack.c.l.b16 %v268
      %v365 = vunpack.c.l.b16 %v269
      %v366 = vunpack.c.l.b16 %v270
      %v367 = vunpack.c.l.b16 %v271
      %v368 = vunpack.c.l.b16 %v272
      %v369 = vunpack.c.l.b16 %v273
      %v370 = vunpack.c.l.b16 %v274
      %v371 = vunpack.c.l.b16 %v275
      %v372 = vunpack.c.l.b16 %v276
      %v373 = vunpack.c.l.b16 %v277
      %v374 = vunpack.c.l.b16 %v278
      %v375 = vpack.c.b16 %v344, %v343
      %v376 = vpack.c.b16 %v346, %v345
      %v377 = vpack.c.b16 %v348, %v347
      %v378 = vpack.c.b16 %v350, %v349
      %v379 = vpack.c.b16 %v352, %v351
      %v380 = vpack.c.b16 %v354, %v353
      %v381 = vpack.c.b16 %v356, %v355
      %v382 = vpack.c.b16 %v358, %v357
      %v383 = vpack.c.b16 %v360, %v359
      %v384 = vpack.c.b16 %v362, %v361
      %v385 = vpack.c.b16 %v364, %v363
      %v386 = vpack.c.b16 %v366, %v365
      %v387 = vpack.c.b16 %v368, %v367
      %v388 = vpack.c.b16 %v370, %v369
      %v389 = vpack.c.b16 %v372, %v371
      %v390 = vpack.c.b16 %v374, %v373
      %v407 = vunpack.c.l.b16 %v279
      %v408 = vunpack.c.l.b16 %v280
      %v409 = vunpack.c.l.b16 %v281
      %v410 = vunpack.c.l.b16 %v282
      %v411 = vunpack.c.l.b16 %v283
      %v412 = vunpack.c.l.b16 %v284
      %v413 = vunpack.c.l.b16 %v285
      %v414 = vunpack.c.l.b16 %v286
      %v415 = vunpack.c.l.b16 %v287
      %v416 = vunpack.c.l.b16 %v288
      %v417 = vunpack.c.l.b16 %v289
      %v418 = vunpack.c.l.b16 %v290
      %v419 = vunpack.c.l.b16 %v291
      %v420 = vunpack.c.l.b16 %v292
      %v421 = vunpack.c.l.b16 %v293
      %v422 = vunpack.c.l.b16 %v294
      %v423 = vpack.c.b16 %v407, %v407
      %v424 = vpack.c.b16 %v408, %v408
      %v425 = vpack.c.b16 %v409, %v409
      %v426 = vpack.c.b16 %v410, %v410
      %v427 = vpack.c.b16 %v411, %v411
      %v428 = vpack.c.b16 %v412, %v412
      %v429 = vpack.c.b16 %v413, %v413
      %v430 = vpack.c.b16 %v414, %v414
      %v431 = vpack.c.b16 %v415, %v415
      %v432 = vpack.c.b16 %v416, %v416
      %v433 = vpack.c.b16 %v417, %v417
      %v434 = vpack.c.b16 %v418, %v418
      %v435 = vpack.c.b16 %v419, %v419
      %v436 = vpack.c.b16 %v420, %v420
      %v437 = vpack.c.b16 %v421, %v421
      %v438 = vpack.c.b16 %v422, %v422
      %vm439 = vsmask.f32 7424
      %v441 = vshrl.u32 %v375, 16
      %v443 = vshll.u32 %v375, 16
      %v445 = vrot.slane %v443, 1
      %v446 = vor.u32 %v441, %v445
      %v448 = vshll.u32 %v423, 16
      %v450 = vrot.slane %v448, 1
      %v451 = vsel %vm439, %v446, %v450
      %v453 = vshrl.u32 %v376, 16
      %v455 = vshll.u32 %v376, 16
      %v457 = vrot.slane %v455, 1
      %v458 = vor.u32 %v453, %v457
      %v460 = vshll.u32 %v424, 16
      %v462 = vrot.slane %v460, 1
      %v463 = vsel %vm439, %v458, %v462
      %v465 = vshrl.u32 %v377, 16
      %v467 = vshll.u32 %v377, 16
      %v469 = vrot.slane %v467, 1
      %v470 = vor.u32 %v465, %v469
      %v472 = vshll.u32 %v425, 16
      %v474 = vrot.slane %v472, 1
      %v475 = vsel %vm439, %v470, %v474
      %v477 = vshrl.u32 %v378, 16
      %v479 = vshll.u32 %v378, 16
      %v481 = vrot.slane %v479, 1
      %v482 = vor.u32 %v477, %v481
      %v484 = vshll.u32 %v426, 16
      %v486 = vrot.slane %v484, 1
      %v487 = vsel %vm439, %v482, %v486
      %v489 = vshrl.u32 %v379, 16
      %v491 = vshll.u32 %v379, 16
      %v493 = vrot.slane %v491, 1
      %v494 = vor.u32 %v489, %v493
      %v496 = vshll.u32 %v427, 16
      %v498 = vrot.slane %v496, 1
      %v499 = vsel %vm439, %v494, %v498
      %v501 = vshrl.u32 %v380, 16
      %v503 = vshll.u32 %v380, 16
      %v505 = vrot.slane %v503, 1
      %v506 = vor.u32 %v501, %v505
      %v508 = vshll.u32 %v428, 16
      %v510 = vrot.slane %v508, 1
      %v511 = vsel %vm439, %v506, %v510
      %v513 = vshrl.u32 %v381, 16
      %v515 = vshll.u32 %v381, 16
      %v517 = vrot.slane %v515, 1
      %v518 = vor.u32 %v513, %v517
      %v520 = vshll.u32 %v429, 16
      %v522 = vrot.slane %v520, 1
      %v523 = vsel %vm439, %v518, %v522
      %v525 = vshrl.u32 %v382, 16
      %v527 = vshll.u32 %v382, 16
      %v529 = vrot.slane %v527, 1
      %v530 = vor.u32 %v525, %v529
      %v532 = vshll.u32 %v430, 16
      %v534 = vrot.slane %v532, 1
      %v535 = vsel %vm439, %v530, %v534
      %v537 = vshrl.u32 %v383, 16
      %v539 = vshll.u32 %v383, 16
      %v541 = vrot.slane %v539, 1
      %v542 = vor.u32 %v537, %v541
      %v544 = vshll.u32 %v431, 16
      %v546 = vrot.slane %v544, 1
      %v547 = vsel %vm439, %v542, %v546
      %v549 = vshrl.u32 %v384, 16
      %v551 = vshll.u32 %v384, 16
      %v553 = vrot.slane %v551, 1
      %v554 = vor.u32 %v549, %v553
      %v556 = vshll.u32 %v432, 16
      %v558 = vrot.slane %v556, 1
      %v559 = vsel %vm439, %v554, %v558
      %v561 = vshrl.u32 %v385, 16
      %v563 = vshll.u32 %v385, 16
      %v565 = vrot.slane %v563, 1
      %v566 = vor.u32 %v561, %v565
      %v568 = vshll.u32 %v433, 16
      %v570 = vrot.slane %v568, 1
      %v571 = vsel %vm439, %v566, %v570
      %v573 = vshrl.u32 %v386, 16
      %v575 = vshll.u32 %v386, 16
      %v577 = vrot.slane %v575, 1
      %v578 = vor.u32 %v573, %v577
      %v580 = vshll.u32 %v434, 16
      %v582 = vrot.slane %v580, 1
      %v583 = vsel %vm439, %v578, %v582
      %v585 = vshrl.u32 %v387, 16
      %v587 = vshll.u32 %v387, 16
      %v589 = vrot.slane %v587, 1
      %v590 = vor.u32 %v585, %v589
      %v592 = vshll.u32 %v435, 16
      %v594 = vrot.slane %v592, 1
      %v595 = vsel %vm439, %v590, %v594
      %v597 = vshrl.u32 %v388, 16
      %v599 = vshll.u32 %v388, 16
      %v601 = vrot.slane %v599, 1
      %v602 = vor.u32 %v597, %v601
      %v604 = vshll.u32 %v436, 16
      %v606 = vrot.slane %v604, 1
      %v607 = vsel %vm439, %v602, %v606
      %v609 = vshrl.u32 %v389, 16
      %v611 = vshll.u32 %v389, 16
      %v613 = vrot.slane %v611, 1
      %v614 = vor.u32 %v609, %v613
      %v616 = vshll.u32 %v437, 16
      %v618 = vrot.slane %v616, 1
      %v619 = vsel %vm439, %v614, %v618
      %v621 = vshrl.u32 %v390, 16
      %v623 = vshll.u32 %v390, 16
      %v625 = vrot.slane %v623, 1
      %v626 = vor.u32 %v621, %v625
      %v628 = vshll.u32 %v438, 16
      %v630 = vrot.slane %v628, 1
      %v631 = vsel %vm439, %v626, %v630
      %632 = vrot.lane.b32.xlu0 %v451, 4
      %v633 = vpop.permute.xlu0 %632
      %634 = vrot.lane.b32.xlu0 %v463, 4
      %v635 = vpop.permute.xlu0 %634
      %636 = vrot.lane.b32.xlu0 %v475, 4
      %v637 = vpop.permute.xlu0 %636
      %638 = vrot.lane.b32.xlu0 %v487, 4
      %v639 = vpop.permute.xlu0 %638
      %640 = vrot.lane.b32.xlu0 %v499, 4
      %v641 = vpop.permute.xlu0 %640
      %642 = vrot.lane.b32.xlu0 %v511, 4
      %v643 = vpop.permute.xlu0 %642
      %644 = vrot.lane.b32.xlu0 %v523, 4
      %v645 = vpop.permute.xlu0 %644
      %646 = vrot.lane.b32.xlu0 %v535, 4
      %v647 = vpop.permute.xlu0 %646
      %648 = vrot.lane.b32.xlu0 %v547, 4
      %v649 = vpop.permute.xlu0 %648
      %650 = vrot.lane.b32.xlu0 %v559, 4
      %v651 = vpop.permute.xlu0 %650
      %652 = vrot.lane.b32.xlu0 %v571, 4
      %v653 = vpop.permute.xlu0 %652
      %654 = vrot.lane.b32.xlu0 %v583, 4
      %v655 = vpop.permute.xlu0 %654
      %656 = vrot.lane.b32.xlu0 %v595, 4
      %v657 = vpop.permute.xlu0 %656
      %658 = vrot.lane.b32.xlu0 %v607, 4
      %v659 = vpop.permute.xlu0 %658
      %660 = vrot.lane.b32.xlu0 %v619, 4
      %v661 = vpop.permute.xlu0 %660
      %662 = vrot.lane.b32.xlu0 %v631, 4
      %v663 = vpop.permute.xlu0 %662
      %v680 = vunpack.c.l.b16 %v295
      %v681 = vunpack.c.l.b16 %v296
      %v682 = vunpack.c.l.b16 %v297
      %v683 = vunpack.c.l.b16 %v298
      %v684 = vunpack.c.l.b16 %v299
      %v685 = vunpack.c.l.b16 %v300
      %v686 = vunpack.c.l.b16 %v301
      %v687 = vunpack.c.l.b16 %v302
      %v688 = vunpack.c.l.b16 %v303
      %v689 = vunpack.c.l.b16 %v304
      %v690 = vunpack.c.l.b16 %v305
      %v691 = vunpack.c.l.b16 %v306
      %v692 = vunpack.c.l.b16 %v307
      %v693 = vunpack.c.l.b16 %v308
      %v694 = vunpack.c.l.b16 %v309
      %v695 = vunpack.c.l.b16 %v310
      %v696 = vpack.c.b16 %v344, %v680
      %v697 = vpack.c.b16 %v346, %v681
      %v698 = vpack.c.b16 %v348, %v682
      %v699 = vpack.c.b16 %v350, %v683
      %v700 = vpack.c.b16 %v352, %v684
      %v701 = vpack.c.b16 %v354, %v685
      %v702 = vpack.c.b16 %v356, %v686
      %v703 = vpack.c.b16 %v358, %v687
      %v704 = vpack.c.b16 %v360, %v688
      %v705 = vpack.c.b16 %v362, %v689
      %v706 = vpack.c.b16 %v364, %v690
      %v707 = vpack.c.b16 %v366, %v691
      %v708 = vpack.c.b16 %v368, %v692
      %v709 = vpack.c.b16 %v370, %v693
      %v710 = vpack.c.b16 %v372, %v694
      %v711 = vpack.c.b16 %v374, %v695
      %vm712 = vcmask 1046528
      %v713 = vrot.slane %v696, 1
      %v714 = vrot.slane %v423, 1
      %v715 = vsel %vm712, %v713, %v714
      %v716 = vrot.slane %v697, 1
      %v717 = vrot.slane %v424, 1
      %v718 = vsel %vm712, %v716, %v717
      %v719 = vrot.slane %v698, 1
      %v720 = vrot.slane %v425, 1
      %v721 = vsel %vm712, %v719, %v720
      %v722 = vrot.slane %v699, 1
      %v723 = vrot.slane %v426, 1
      %v724 = vsel %vm712, %v722, %v723
      %v725 = vrot.slane %v700, 1
      %v726 = vrot.slane %v427, 1
      %v727 = vsel %vm712, %v725, %v726
      %v728 = vrot.slane %v701, 1
      %v729 = vrot.slane %v428, 1
      %v730 = vsel %vm712, %v728, %v729
      %v731 = vrot.slane %v702, 1
      %v732 = vrot.slane %v429, 1
      %v733 = vsel %vm712, %v731, %v732
      %v734 = vrot.slane %v703, 1
      %v735 = vrot.slane %v430, 1
      %v736 = vsel %vm712, %v734, %v735
      %v737 = vrot.slane %v704, 1
      %v738 = vrot.slane %v431, 1
      %v739 = vsel %vm712, %v737, %v738
      %v740 = vrot.slane %v705, 1
      %v741 = vrot.slane %v432, 1
      %v742 = vsel %vm712, %v740, %v741
      %v743 = vrot.slane %v706, 1
      %v744 = vrot.slane %v433, 1
      %v745 = vsel %vm712, %v743, %v744
      %v746 = vrot.slane %v707, 1
      %v747 = vrot.slane %v434, 1
      %v748 = vsel %vm712, %v746, %v747
      %v749 = vrot.slane %v708, 1
      %v750 = vrot.slane %v435, 1
      %v751 = vsel %vm712, %v749, %v750
      %v752 = vrot.slane %v709, 1
      %v753 = vrot.slane %v436, 1
      %v754 = vsel %vm712, %v752, %v753
      %v755 = vrot.slane %v710, 1
      %v756 = vrot.slane %v437, 1
      %v757 = vsel %vm712, %v755, %v756
      %v758 = vrot.slane %v711, 1
      %v759 = vrot.slane %v438, 1
      %v760 = vsel %vm712, %v758, %v759
      %761 = vrot.lane.b32.xlu0 %v715, 8
      %v762 = vpop.permute.xlu0 %761
      %763 = vrot.lane.b32.xlu0 %v718, 8
      %v764 = vpop.permute.xlu0 %763
      %765 = vrot.lane.b32.xlu0 %v721, 8
      %v766 = vpop.permute.xlu0 %765
      %767 = vrot.lane.b32.xlu0 %v724, 8
      %v768 = vpop.permute.xlu0 %767
      %769 = vrot.lane.b32.xlu0 %v727, 8
      %v770 = vpop.permute.xlu0 %769
      %771 = vrot.lane.b32.xlu0 %v730, 8
      %v772 = vpop.permute.xlu0 %771
      %773 = vrot.lane.b32.xlu0 %v733, 8
      %v774 = vpop.permute.xlu0 %773
      %775 = vrot.lane.b32.xlu0 %v736, 8
      %v776 = vpop.permute.xlu0 %775
      %777 = vrot.lane.b32.xlu0 %v739, 8
      %v778 = vpop.permute.xlu0 %777
      %779 = vrot.lane.b32.xlu0 %v742, 8
      %v780 = vpop.permute.xlu0 %779
      %781 = vrot.lane.b32.xlu0 %v745, 8
      %v782 = vpop.permute.xlu0 %781
      %783 = vrot.lane.b32.xlu0 %v748, 8
      %v784 = vpop.permute.xlu0 %783
      %785 = vrot.lane.b32.xlu0 %v751, 8
      %v786 = vpop.permute.xlu0 %785
      %787 = vrot.lane.b32.xlu0 %v754, 8
      %v788 = vpop.permute.xlu0 %787
      %789 = vrot.lane.b32.xlu0 %v757, 8
      %v790 = vpop.permute.xlu0 %789
      %791 = vrot.lane.b32.xlu0 %v760, 8
      %v792 = vpop.permute.xlu0 %791
      %vm793 = vcmask 31744
      %v795 = vsel %vm793, %v375, %v633
      %v797 = vsel %vm793, %v376, %v635
      %v799 = vsel %vm793, %v377, %v637
      %v801 = vsel %vm793, %v378, %v639
      %v803 = vsel %vm793, %v379, %v641
      %v805 = vsel %vm793, %v380, %v643
      %v807 = vsel %vm793, %v381, %v645
      %v809 = vsel %vm793, %v382, %v647
      %v811 = vsel %vm793, %v383, %v649
      %v813 = vsel %vm793, %v384, %v651
      %v815 = vsel %vm793, %v385, %v653
      %v817 = vsel %vm793, %v386, %v655
      %v819 = vsel %vm793, %v387, %v657
      %v821 = vsel %vm793, %v388, %v659
      %v823 = vsel %vm793, %v389, %v661
      %v825 = vsel %vm793, %v390, %v663
      %vm826 = vcmask 64512
      %v828 = vsel %vm826, %v795, %v762
      %v830 = vsel %vm826, %v797, %v764
      %v832 = vsel %vm826, %v799, %v766
      %v834 = vsel %vm826, %v801, %v768
      %v836 = vsel %vm826, %v803, %v770
      %v838 = vsel %vm826, %v805, %v772
      %v840 = vsel %vm826, %v807, %v774
      %v842 = vsel %vm826, %v809, %v776
      %v844 = vsel %vm826, %v811, %v778
      %v846 = vsel %vm826, %v813, %v780
      %v848 = vsel %vm826, %v815, %v782
      %v850 = vsel %vm826, %v817, %v784
      %v852 = vsel %vm826, %v819, %v786
      %v854 = vsel %vm826, %v821, %v788
      %v856 = vsel %vm826, %v823, %v790
      %v858 = vsel %vm826, %v825, %v792
      %v859 = vld [vmem:[%s206] sm:$0xff]
      %v860 = vld [vmem:[%s206 + $0x8] sm:$0xff]
      %v861 = vld [vmem:[%s206 + $0x10] sm:$0xff]
      %v862 = vld [vmem:[%s206 + $0x18] sm:$0xff]
      %v863 = vld [vmem:[%s206 + $0x20] sm:$0xff]
      %v864 = vld [vmem:[%s206 + $0x28] sm:$0xff]
      %v865 = vld [vmem:[%s206 + $0x30] sm:$0xff]
      %v866 = vld [vmem:[%s206 + $0x38] sm:$0xff]
      %v867 = vld [vmem:[%s206 + $0x40] sm:$0xff]
      %v868 = vld [vmem:[%s206 + $0x48] sm:$0xff]
      %v869 = vld [vmem:[%s206 + $0x50] sm:$0xff]
      %v870 = vld [vmem:[%s206 + $0x58] sm:$0xff]
      %v871 = vld [vmem:[%s206 + $0x60] sm:$0xff]
      %v872 = vld [vmem:[%s206 + $0x68] sm:$0xff]
      %v873 = vld [vmem:[%s206 + $0x70] sm:$0xff]
      %v874 = vld [vmem:[%s206 + $0x78] sm:$0xff]
      %v875 = vld [vmem:[%s206 + $0x80] sm:$0xff]
      %v876 = vld [vmem:[%s206 + $0x88] sm:$0xff]
      %v877 = vld [vmem:[%s206 + $0x90] sm:$0xff]
      %v878 = vld [vmem:[%s206 + $0x98] sm:$0xff]
      %v879 = vld [vmem:[%s206 + $0xa0] sm:$0xff]
      %v880 = vld [vmem:[%s206 + $0xa8] sm:$0xff]
      %v881 = vld [vmem:[%s206 + $0xb0] sm:$0xff]
      %v882 = vld [vmem:[%s206 + $0xb8] sm:$0xff]
      %v883 = vld [vmem:[%s206 + $0xc0] sm:$0xff]
      %v884 = vld [vmem:[%s206 + $0xc8] sm:$0xff]
      %v885 = vld [vmem:[%s206 + $0xd0] sm:$0xff]
      %v886 = vld [vmem:[%s206 + $0xd8] sm:$0xff]
      %v887 = vld [vmem:[%s206 + $0xe0] sm:$0xff]
      %v888 = vld [vmem:[%s206 + $0xe8] sm:$0xff]
      %v889 = vld [vmem:[%s206 + $0xf0] sm:$0xff]
      %v890 = vld [vmem:[%s206 + $0xf8] sm:$0xff]
      %v891 = vld [vmem:[%s1] sm:$0xf]
      %v892 = vld [vmem:[%s1 + $0x4] sm:$0x3]
      %v895 = vunpack.c.l.b16 %v891
      %v896 = vunpack.c.l.b16 %v892
      %v897 = vpack.c.b16 %v896, %v895
      %vm898 = vcmask 97280
      %v899 = vsel %vm898, %v828, 0
      %v901 = vsel %vm898, %v830, 0
      %v903 = vsel %vm898, %v832, 0
      %v905 = vsel %vm898, %v834, 0
      %v907 = vsel %vm898, %v836, 0
      %v909 = vsel %vm898, %v838, 0
      %v911 = vsel %vm898, %v840, 0
      %v913 = vsel %vm898, %v842, 0
      %v915 = vsel %vm898, %v844, 0
      %v917 = vsel %vm898, %v846, 0
      %v919 = vsel %vm898, %v848, 0
      %v921 = vsel %vm898, %v850, 0
      %v923 = vsel %vm898, %v852, 0
      %v925 = vsel %vm898, %v854, 0
      %v927 = vsel %vm898, %v856, 0
      %v929 = vsel %vm898, %v858, 0
      %vm931 = vcmask 1045504
      %v933 = vsel %vm931, %v897, 0
      %935 = vmatprep.subr.bf16.mxu0 0
      %936 = vmatpush1.bf16.msra.mxu0 %v933
      %937 = vmatprep.subr.bf16.mxu0 0
      %938 = vmatpush1.bf16.msra.mxu0 0
      %939 = vmatprep.subr.bf16.mxu0 0
      %940 = vmatpush1.bf16.msra.mxu0 0
      %941 = vmatprep.subr.bf16.mxu0 0
      %942 = vmatpush1.bf16.msra.mxu0 0
      %943 = vmatprep.subr.bf16.mxu0 0
      %944 = vmatpush1.bf16.msra.mxu0 0
      %945 = vmatprep.subr.bf16.mxu0 0
      %946 = vmatpush1.bf16.msra.mxu0 0
      %947 = vmatprep.subr.bf16.mxu0 0
      %948 = vmatpush1.bf16.msra.mxu0 0
      %949 = vmatprep.subr.bf16.mxu0 0
      %950 = vmatpush1.bf16.msra.mxu0 0
      %951 = vmatprep.subr.bf16.mxu0 0
      %952 = vmatpush1.bf16.msra.mxu0 0
      %953 = vmatprep.subr.bf16.mxu0 0
      %954 = vmatpush1.bf16.msra.mxu0 0
      %955 = vmatprep.subr.bf16.mxu0 0
      %956 = vmatpush1.bf16.msra.mxu0 0
      %957 = vmatprep.subr.bf16.mxu0 0
      %958 = vmatpush1.bf16.msra.mxu0 0
      %959 = vmatprep.subr.bf16.mxu0 0
      %960 = vmatpush1.bf16.msra.mxu0 0
      %961 = vmatprep.subr.bf16.mxu0 0
      %962 = vmatpush1.bf16.msra.mxu0 0
      %963 = vmatprep.subr.bf16.mxu0 0
      %964 = vmatpush1.bf16.msra.mxu0 0
      %965 = vmatprep.subr.bf16.mxu0 0
      %966 = vmatpush1.bf16.msra.mxu0 0
      %967 = vmatprep.mubr.bf16.mxu0 0
      %968 = vmatmul.mubr.bf16.gmra.mrb[0].mxu0 %v899
      %v969 = vpop.f32.mrb[0].mxu0
      %v970 = vadd.f32 0.0, %v969
      %v971 = vpop.f32.mrb[0].mxu0
      %v972 = vpop.f32.mrb[0].mxu0
      %v973 = vadd.f32 0.0, %v972
      %v974 = vpop.f32.mrb[0].mxu0
      %975 = vmatprep.mubr.bf16.mxu0 0
      %976 = vmatmul.mubr.bf16.gmra.mrb[0].mxu0 %v901
      %v977 = vpop.f32.mrb[0].mxu0
      %v978 = vadd.f32 0.0, %v977
      %v979 = vpop.f32.mrb[0].mxu0
      %v980 = vpop.f32.mrb[0].mxu0
      %v981 = vadd.f32 0.0, %v980
      %v982 = vpop.f32.mrb[0].mxu0
      %983 = vmatprep.mubr.bf16.mxu0 0
      %984 = vmatmul.mubr.bf16.gmra.mrb[0].mxu0 %v903
      %v985 = vpop.f32.mrb[0].mxu0
      %v986 = vadd.f32 0.0, %v985
      %v987 = vpop.f32.mrb[0].mxu0
      %v988 = vpop.f32.mrb[0].mxu0
      %v989 = vadd.f32 0.0, %v988
      %v990 = vpop.f32.mrb[0].mxu0
      %991 = vmatprep.mubr.bf16.mxu0 0
      %992 = vmatmul.mubr.bf16.gmra.mrb[0].mxu0 %v905
      %v993 = vpop.f32.mrb[0].mxu0
      %v994 = vadd.f32 0.0, %v993
      %v995 = vpop.f32.mrb[0].mxu0
      %v996 = vpop.f32.mrb[0].mxu0
      %v997 = vadd.f32 0.0, %v996
      %v998 = vpop.f32.mrb[0].mxu0
      %999 = vmatprep.mubr.bf16.mxu0 0
      %1000 = vmatmul.mubr.bf16.gmra.mrb[0].mxu0 %v907
      %v1001 = vpop.f32.mrb[0].mxu0
      %v1002 = vadd.f32 0.0, %v1001
      %v1003 = vpop.f32.mrb[0].mxu0
      %v1004 = vpop.f32.mrb[0].mxu0
      %v1005 = vadd.f32 0.0, %v1004
      %v1006 = vpop.f32.mrb[0].mxu0
      %1007 = vmatprep.mubr.bf16.mxu0 0
      %1008 = vmatmul.mubr.bf16.gmra.mrb[0].mxu0 %v909
      %v1009 = vpop.f32.mrb[0].mxu0
      %v1010 = vadd.f32 0.0, %v1009
      %v1011 = vpop.f32.mrb[0].mxu0
      %v1012 = vpop.f32.mrb[0].mxu0
      %v1013 = vadd.f32 0.0, %v1012
      %v1014 = vpop.f32.mrb[0].mxu0
      %1015 = vmatprep.mubr.bf16.mxu0 0
      %1016 = vmatmul.mubr.bf16.gmra.mrb[0].mxu0 %v911
      %v1017 = vpop.f32.mrb[0].mxu0
      %v1018 = vadd.f32 0.0, %v1017
      %v1019 = vpop.f32.mrb[0].mxu0
      %v1020 = vpop.f32.mrb[0].mxu0
      %v1021 = vadd.f32 0.0, %v1020
      %v1022 = vpop.f32.mrb[0].mxu0
      %1023 = vmatprep.mubr.bf16.mxu0 0
      %1024 = vmatmul.mubr.bf16.gmra.mrb[0].mxu0 %v913
      %v1025 = vpop.f32.mrb[0].mxu0
      %v1026 = vadd.f32 0.0, %v1025
      %v1027 = vpop.f32.mrb[0].mxu0
      %v1028 = vpop.f32.mrb[0].mxu0
      %v1029 = vadd.f32 0.0, %v1028
      %v1030 = vpop.f32.mrb[0].mxu0
      %1031 = vmatprep.mubr.bf16.mxu0 0
      %1032 = vmatmul.mubr.bf16.gmra.mrb[0].mxu0 %v915
      %v1033 = vpop.f32.mrb[0].mxu0
      %v1034 = vadd.f32 0.0, %v1033
      %v1035 = vpop.f32.mrb[0].mxu0
      %v1036 = vpop.f32.mrb[0].mxu0
      %v1037 = vadd.f32 0.0, %v1036
      %v1038 = vpop.f32.mrb[0].mxu0
      %1039 = vmatprep.mubr.bf16.mxu0 0
      %1040 = vmatmul.mubr.bf16.gmra.mrb[0].mxu0 %v917
      %v1041 = vpop.f32.mrb[0].mxu0
      %v1042 = vadd.f32 0.0, %v1041
      %v1043 = vpop.f32.mrb[0].mxu0
      %v1044 = vpop.f32.mrb[0].mxu0
      %v1045 = vadd.f32 0.0, %v1044
      %v1046 = vpop.f32.mrb[0].mxu0
      %1047 = vmatprep.mubr.bf16.mxu0 0
      %1048 = vmatmul.mubr.bf16.gmra.mrb[0].mxu0 %v919
      %v1049 = vpop.f32.mrb[0].mxu0
      %v1050 = vadd.f32 0.0, %v1049
      %v1051 = vpop.f32.mrb[0].mxu0
      %v1052 = vpop.f32.mrb[0].mxu0
      %v1053 = vadd.f32 0.0, %v1052
      %v1054 = vpop.f32.mrb[0].mxu0
      %1055 = vmatprep.mubr.bf16.mxu0 0
      %1056 = vmatmul.mubr.bf16.gmra.mrb[0].mxu0 %v921
      %v1057 = vpop.f32.mrb[0].mxu0
      %v1058 = vadd.f32 0.0, %v1057
      %v1059 = vpop.f32.mrb[0].mxu0
      %v1060 = vpop.f32.mrb[0].mxu0
      %v1061 = vadd.f32 0.0, %v1060
      %v1062 = vpop.f32.mrb[0].mxu0
      %1063 = vmatprep.mubr.bf16.mxu0 0
      %1064 = vmatmul.mubr.bf16.gmra.mrb[0].mxu0 %v923
      %v1065 = vpop.f32.mrb[0].mxu0
      %v1066 = vadd.f32 0.0, %v1065
      %v1067 = vpop.f32.mrb[0].mxu0
      %v1068 = vpop.f32.mrb[0].mxu0
      %v1069 = vadd.f32 0.0, %v1068
      %v1070 = vpop.f32.mrb[0].mxu0
      %1071 = vmatprep.mubr.bf16.mxu0 0
      %1072 = vmatmul.mubr.bf16.gmra.mrb[0].mxu0 %v925
      %v1073 = vpop.f32.mrb[0].mxu0
      %v1074 = vadd.f32 0.0, %v1073
      %v1075 = vpop.f32.mrb[0].mxu0
      %v1076 = vpop.f32.mrb[0].mxu0
      %v1077 = vadd.f32 0.0, %v1076
      %v1078 = vpop.f32.mrb[0].mxu0
      %1079 = vmatprep.mubr.bf16.mxu0 0
      %1080 = vmatmul.mubr.bf16.gmra.mrb[0].mxu0 %v927
      %v1081 = vpop.f32.mrb[0].mxu0
      %v1082 = vadd.f32 0.0, %v1081
      %v1083 = vpop.f32.mrb[0].mxu0
      %v1084 = vpop.f32.mrb[0].mxu0
      %v1085 = vadd.f32 0.0, %v1084
      %v1086 = vpop.f32.mrb[0].mxu0
      %1087 = vmatprep.mubr.bf16.mxu0 0
      %1088 = vmatmul.mubr.bf16.gmra.mrb[0].mxu0 %v929
      %v1089 = vpop.f32.mrb[0].mxu0
      %v1090 = vadd.f32 0.0, %v1089
      %v1091 = vpop.f32.mrb[0].mxu0
      %v1092 = vpop.f32.mrb[0].mxu0
      %v1093 = vadd.f32 0.0, %v1092
      %v1094 = vpop.f32.mrb[0].mxu0
      %1095 = vdwg.mxu0
      %v1096 = vadd.f32 %v859, %v970
      %v1097 = vadd.f32 %v860, %v973
      %v1098 = vadd.f32 %v861, %v978
      %v1099 = vadd.f32 %v862, %v981
      %v1100 = vadd.f32 %v863, %v986
      %v1101 = vadd.f32 %v864, %v989
      %v1102 = vadd.f32 %v865, %v994
      %v1103 = vadd.f32 %v866, %v997
      %v1104 = vadd.f32 %v867, %v1002
      %v1105 = vadd.f32 %v868, %v1005
      %v1106 = vadd.f32 %v869, %v1010
      %v1107 = vadd.f32 %v870, %v1013
      %v1108 = vadd.f32 %v871, %v1018
      %v1109 = vadd.f32 %v872, %v1021
      %v1110 = vadd.f32 %v873, %v1026
      %v1111 = vadd.f32 %v874, %v1029
      %v1112 = vadd.f32 %v875, %v1034
      %v1113 = vadd.f32 %v876, %v1037
      %v1114 = vadd.f32 %v877, %v1042
      %v1115 = vadd.f32 %v878, %v1045
      %v1116 = vadd.f32 %v879, %v1050
      %v1117 = vadd.f32 %v880, %v1053
      %v1118 = vadd.f32 %v881, %v1058
      %v1119 = vadd.f32 %v882, %v1061
      %v1120 = vadd.f32 %v883, %v1066
      %v1121 = vadd.f32 %v884, %v1069
      %v1122 = vadd.f32 %v885, %v1074
      %v1123 = vadd.f32 %v886, %v1077
      %v1124 = vadd.f32 %v887, %v1082
      %v1125 = vadd.f32 %v888, %v1085
      %v1126 = vadd.f32 %v889, %v1090
      %v1127 = vadd.f32 %v890, %v1093
      %1128 = vst [vmem:[%s206] sm:$0xff] %v1096
      %1129 = vst [vmem:[%s206 + $0x8] sm:$0xff] %v1097
      %1130 = vst [vmem:[%s206 + $0x10] sm:$0xff] %v1098
      %1131 = vst [vmem:[%s206 + $0x18] sm:$0xff] %v1099
      %1132 = vst [vmem:[%s206 + $0x20] sm:$0xff] %v1100
      %1133 = vst [vmem:[%s206 + $0x28] sm:$0xff] %v1101
      %1134 = vst [vmem:[%s206 + $0x30] sm:$0xff] %v1102
      %1135 = vst [vmem:[%s206 + $0x38] sm:$0xff] %v1103
      %1136 = vst [vmem:[%s206 + $0x40] sm:$0xff] %v1104
      %1137 = vst [vmem:[%s206 + $0x48] sm:$0xff] %v1105
      %1138 = vst [vmem:[%s206 + $0x50] sm:$0xff] %v1106
      %1139 = vst [vmem:[%s206 + $0x58] sm:$0xff] %v1107
      %1140 = vst [vmem:[%s206 + $0x60] sm:$0xff] %v1108
      %1141 = vst [vmem:[%s206 + $0x68] sm:$0xff] %v1109
      %1142 = vst [vmem:[%s206 + $0x70] sm:$0xff] %v1110
      %1143 = vst [vmem:[%s206 + $0x78] sm:$0xff] %v1111
      %1144 = vst [vmem:[%s206 + $0x80] sm:$0xff] %v1112
      %1145 = vst [vmem:[%s206 + $0x88] sm:$0xff] %v1113
      %1146 = vst [vmem:[%s206 + $0x90] sm:$0xff] %v1114
      %1147 = vst [vmem:[%s206 + $0x98] sm:$0xff] %v1115
      %1148 = vst [vmem:[%s206 + $0xa0] sm:$0xff] %v1116
      %1149 = vst [vmem:[%s206 + $0xa8] sm:$0xff] %v1117
      %1150 = vst [vmem:[%s206 + $0xb0] sm:$0xff] %v1118
      %1151 = vst [vmem:[%s206 + $0xb8] sm:$0xff] %v1119
      %1152 = vst [vmem:[%s206 + $0xc0] sm:$0xff] %v1120
      %1153 = vst [vmem:[%s206 + $0xc8] sm:$0xff] %v1121
      %1154 = vst [vmem:[%s206 + $0xd0] sm:$0xff] %v1122
      %1155 = vst [vmem:[%s206 + $0xd8] sm:$0xff] %v1123
      %1156 = vst [vmem:[%s206 + $0xe0] sm:$0xff] %v1124
      %1157 = vst [vmem:[%s206 + $0xe8] sm:$0xff] %v1125
      %1158 = vst [vmem:[%s206 + $0xf0] sm:$0xff] %v1126
      %1159 = vst [vmem:[%s206 + $0xf8] sm:$0xff] %v1127
      %s1160 = scalar_lea.vmem %s197, 12
      %v1161 = vld [vmem:[%s1160] sm:$0xf]
      %v1162 = vld [vmem:[%s1160 + $0x4] sm:$0xf]
      %v1163 = vld [vmem:[%s1160 + $0xc] sm:$0xf]
      %v1164 = vld [vmem:[%s1160 + $0x10] sm:$0xf]
      %v1165 = vld [vmem:[%s1160 + $0x18] sm:$0xf]
      %v1166 = vld [vmem:[%s1160 + $0x1c] sm:$0xf]
      %v1167 = vld [vmem:[%s1160 + $0x24] sm:$0xf]
      %v1168 = vld [vmem:[%s1160 + $0x28] sm:$0xf]
      %v1169 = vld [vmem:[%s1160 + $0x30] sm:$0xf]
      %v1170 = vld [vmem:[%s1160 + $0x34] sm:$0xf]
      %v1171 = vld [vmem:[%s1160 + $0x3c] sm:$0xf]
      %v1172 = vld [vmem:[%s1160 + $0x40] sm:$0xf]
      %v1173 = vld [vmem:[%s1160 + $0x48] sm:$0xf]
      %v1174 = vld [vmem:[%s1160 + $0x4c] sm:$0xf]
      %v1175 = vld [vmem:[%s1160 + $0x54] sm:$0xf]
      %v1176 = vld [vmem:[%s1160 + $0x58] sm:$0xf]
      %v1177 = vld [vmem:[%s1160 + $0x60] sm:$0xf]
      %v1178 = vld [vmem:[%s1160 + $0x64] sm:$0xf]
      %v1179 = vld [vmem:[%s1160 + $0x6c] sm:$0xf]
      %v1180 = vld [vmem:[%s1160 + $0x70] sm:$0xf]
      %v1181 = vld [vmem:[%s1160 + $0x78] sm:$0xf]
      %v1182 = vld [vmem:[%s1160 + $0x7c] sm:$0xf]
      %v1183 = vld [vmem:[%s1160 + $0x84] sm:$0xf]
      %v1184 = vld [vmem:[%s1160 + $0x88] sm:$0xf]
      %v1185 = vld [vmem:[%s1160 + $0x90] sm:$0xf]
      %v1186 = vld [vmem:[%s1160 + $0x94] sm:$0xf]
      %v1187 = vld [vmem:[%s1160 + $0x9c] sm:$0xf]
      %v1188 = vld [vmem:[%s1160 + $0xa0] sm:$0xf]
      %v1189 = vld [vmem:[%s1160 + $0xa8] sm:$0xf]
      %v1190 = vld [vmem:[%s1160 + $0xac] sm:$0xf]
      %v1191 = vld [vmem:[%s1160 + $0xb4] sm:$0xf]
      %v1192 = vld [vmem:[%s1160 + $0xb8] sm:$0xf]
      %v1193 = vld [vmem:[%s1160 + $0x8] sm:$0x1]
      %v1194 = vld [vmem:[%s1160 + $0x14] sm:$0x1]
      %v1195 = vld [vmem:[%s1160 + $0x20] sm:$0x1]
      %v1196 = vld [vmem:[%s1160 + $0x2c] sm:$0x1]
      %v1197 = vld [vmem:[%s1160 + $0x38] sm:$0x1]
      %v1198 = vld [vmem:[%s1160 + $0x44] sm:$0x1]
      %v1199 = vld [vmem:[%s1160 + $0x50] sm:$0x1]
      %v1200 = vld [vmem:[%s1160 + $0x5c] sm:$0x1]
      %v1201 = vld [vmem:[%s1160 + $0x68] sm:$0x1]
      %v1202 = vld [vmem:[%s1160 + $0x74] sm:$0x1]
      %v1203 = vld [vmem:[%s1160 + $0x80] sm:$0x1]
      %v1204 = vld [vmem:[%s1160 + $0x8c] sm:$0x1]
      %v1205 = vld [vmem:[%s1160 + $0x98] sm:$0x1]
      %v1206 = vld [vmem:[%s1160 + $0xa4] sm:$0x1]
      %v1207 = vld [vmem:[%s1160 + $0xb0] sm:$0x1]
      %v1208 = vld [vmem:[%s1160 + $0xbc] sm:$0x1]
      %v1209 = vld [vmem:[%s1160] sm:$0xe]
      %v1210 = vld [vmem:[%s1160 + $0xc] sm:$0xe]
      %v1211 = vld [vmem:[%s1160 + $0x18] sm:$0xe]
      %v1212 = vld [vmem:[%s1160 + $0x24] sm:$0xe]
      %v1213 = vld [vmem:[%s1160 + $0x30] sm:$0xe]
      %v1214 = vld [vmem:[%s1160 + $0x3c] sm:$0xe]
      %v1215 = vld [vmem:[%s1160 + $0x48] sm:$0xe]
      %v1216 = vld [vmem:[%s1160 + $0x54] sm:$0xe]
      %v1217 = vld [vmem:[%s1160 + $0x60] sm:$0xe]
      %v1218 = vld [vmem:[%s1160 + $0x6c] sm:$0xe]
      %v1219 = vld [vmem:[%s1160 + $0x78] sm:$0xe]
      %v1220 = vld [vmem:[%s1160 + $0x84] sm:$0xe]
      %v1221 = vld [vmem:[%s1160 + $0x90] sm:$0xe]
      %v1222 = vld [vmem:[%s1160 + $0x9c] sm:$0xe]
      %v1223 = vld [vmem:[%s1160 + $0xa8] sm:$0xe]
      %v1224 = vld [vmem:[%s1160 + $0xb4] sm:$0xe]
      %v1257 = vunpack.c.l.b16 %v1161
      %v1258 = vunpack.c.l.b16 %v1162
      %v1259 = vunpack.c.l.b16 %v1163
      %v1260 = vunpack.c.l.b16 %v1164
      %v1261 = vunpack.c.l.b16 %v1165
      %v1262 = vunpack.c.l.b16 %v1166
      %v1263 = vunpack.c.l.b16 %v1167
      %v1264 = vunpack.c.l.b16 %v1168
      %v1265 = vunpack.c.l.b16 %v1169
      %v1266 = vunpack.c.l.b16 %v1170
      %v1267 = vunpack.c.l.b16 %v1171
      %v1268 = vunpack.c.l.b16 %v1172
      %v1269 = vunpack.c.l.b16 %v1173
      %v1270 = vunpack.c.l.b16 %v1174
      %v1271 = vunpack.c.l.b16 %v1175
      %v1272 = vunpack.c.l.b16 %v1176
      %v1273 = vunpack.c.l.b16 %v1177
      %v1274 = vunpack.c.l.b16 %v1178
      %v1275 = vunpack.c.l.b16 %v1179
      %v1276 = vunpack.c.l.b16 %v1180
      %v1277 = vunpack.c.l.b16 %v1181
      %v1278 = vunpack.c.l.b16 %v1182
      %v1279 = vunpack.c.l.b16 %v1183
      %v1280 = vunpack.c.l.b16 %v1184
      %v1281 = vunpack.c.l.b16 %v1185
      %v1282 = vunpack.c.l.b16 %v1186
      %v1283 = vunpack.c.l.b16 %v1187
      %v1284 = vunpack.c.l.b16 %v1188
      %v1285 = vunpack.c.l.b16 %v1189
      %v1286 = vunpack.c.l.b16 %v1190
      %v1287 = vunpack.c.l.b16 %v1191
      %v1288 = vunpack.c.l.b16 %v1192
      %v1289 = vpack.c.b16 %v1258, %v1257
      %v1290 = vpack.c.b16 %v1260, %v1259
      %v1291 = vpack.c.b16 %v1262, %v1261
      %v1292 = vpack.c.b16 %v1264, %v1263
      %v1293 = vpack.c.b16 %v1266, %v1265
      %v1294 = vpack.c.b16 %v1268, %v1267
      %v1295 = vpack.c.b16 %v1270, %v1269
      %v1296 = vpack.c.b16 %v1272, %v1271
      %v1297 = vpack.c.b16 %v1274, %v1273
      %v1298 = vpack.c.b16 %v1276, %v1275
      %v1299 = vpack.c.b16 %v1278, %v1277
      %v1300 = vpack.c.b16 %v1280, %v1279
      %v1301 = vpack.c.b16 %v1282, %v1281
      %v1302 = vpack.c.b16 %v1284, %v1283
      %v1303 = vpack.c.b16 %v1286, %v1285
      %v1304 = vpack.c.b16 %v1288, %v1287
      %v1321 = vunpack.c.l.b16 %v1193
      %v1322 = vunpack.c.l.b16 %v1194
      %v1323 = vunpack.c.l.b16 %v1195
      %v1324 = vunpack.c.l.b16 %v1196
      %v1325 = vunpack.c.l.b16 %v1197
      %v1326 = vunpack.c.l.b16 %v1198
      %v1327 = vunpack.c.l.b16 %v1199
      %v1328 = vunpack.c.l.b16 %v1200
      %v1329 = vunpack.c.l.b16 %v1201
      %v1330 = vunpack.c.l.b16 %v1202
      %v1331 = vunpack.c.l.b16 %v1203
      %v1332 = vunpack.c.l.b16 %v1204
      %v1333 = vunpack.c.l.b16 %v1205
      %v1334 = vunpack.c.l.b16 %v1206
      %v1335 = vunpack.c.l.b16 %v1207
      %v1336 = vunpack.c.l.b16 %v1208
      %v1337 = vpack.c.b16 %v1321, %v1321
      %v1338 = vpack.c.b16 %v1322, %v1322
      %v1339 = vpack.c.b16 %v1323, %v1323
      %v1340 = vpack.c.b16 %v1324, %v1324
      %v1341 = vpack.c.b16 %v1325, %v1325
      %v1342 = vpack.c.b16 %v1326, %v1326
      %v1343 = vpack.c.b16 %v1327, %v1327
      %v1344 = vpack.c.b16 %v1328, %v1328
      %v1345 = vpack.c.b16 %v1329, %v1329
      %v1346 = vpack.c.b16 %v1330, %v1330
      %v1347 = vpack.c.b16 %v1331, %v1331
      %v1348 = vpack.c.b16 %v1332, %v1332
      %v1349 = vpack.c.b16 %v1333, %v1333
      %v1350 = vpack.c.b16 %v1334, %v1334
      %v1351 = vpack.c.b16 %v1335, %v1335
      %v1352 = vpack.c.b16 %v1336, %v1336
      %v1354 = vshrl.u32 %v1289, 16
      %v1356 = vshll.u32 %v1289, 16
      %v1358 = vrot.slane %v1356, 1
      %v1359 = vor.u32 %v1354, %v1358
      %v1361 = vshll.u32 %v1337, 16
      %v1363 = vrot.slane %v1361, 1
      %v1364 = vsel %vm439, %v1359, %v1363
      %v1366 = vshrl.u32 %v1290, 16
      %v1368 = vshll.u32 %v1290, 16
      %v1370 = vrot.slane %v1368, 1
      %v1371 = vor.u32 %v1366, %v1370
      %v1373 = vshll.u32 %v1338, 16
      %v1375 = vrot.slane %v1373, 1
      %v1376 = vsel %vm439, %v1371, %v1375
      %v1378 = vshrl.u32 %v1291, 16
      %v1380 = vshll.u32 %v1291, 16
      %v1382 = vrot.slane %v1380, 1
      %v1383 = vor.u32 %v1378, %v1382
      %v1385 = vshll.u32 %v1339, 16
      %v1387 = vrot.slane %v1385, 1
      %v1388 = vsel %vm439, %v1383, %v1387
      %v1390 = vshrl.u32 %v1292, 16
      %v1392 = vshll.u32 %v1292, 16
      %v1394 = vrot.slane %v1392, 1
      %v1395 = vor.u32 %v1390, %v1394
      %v1397 = vshll.u32 %v1340, 16
      %v1399 = vrot.slane %v1397, 1
      %v1400 = vsel %vm439, %v1395, %v1399
      %v1402 = vshrl.u32 %v1293, 16
      %v1404 = vshll.u32 %v1293, 16
      %v1406 = vrot.slane %v1404, 1
      %v1407 = vor.u32 %v1402, %v1406
      %v1409 = vshll.u32 %v1341, 16
      %v1411 = vrot.slane %v1409, 1
      %v1412 = vsel %vm439, %v1407, %v1411
      %v1414 = vshrl.u32 %v1294, 16
      %v1416 = vshll.u32 %v1294, 16
      %v1418 = vrot.slane %v1416, 1
      %v1419 = vor.u32 %v1414, %v1418
      %v1421 = vshll.u32 %v1342, 16
      %v1423 = vrot.slane %v1421, 1
      %v1424 = vsel %vm439, %v1419, %v1423
      %v1426 = vshrl.u32 %v1295, 16
      %v1428 = vshll.u32 %v1295, 16
      %v1430 = vrot.slane %v1428, 1
      %v1431 = vor.u32 %v1426, %v1430
      %v1433 = vshll.u32 %v1343, 16
      %v1435 = vrot.slane %v1433, 1
      %v1436 = vsel %vm439, %v1431, %v1435
      %v1438 = vshrl.u32 %v1296, 16
      %v1440 = vshll.u32 %v1296, 16
      %v1442 = vrot.slane %v1440, 1
      %v1443 = vor.u32 %v1438, %v1442
      %v1445 = vshll.u32 %v1344, 16
      %v1447 = vrot.slane %v1445, 1
      %v1448 = vsel %vm439, %v1443, %v1447
      %v1450 = vshrl.u32 %v1297, 16
      %v1452 = vshll.u32 %v1297, 16
      %v1454 = vrot.slane %v1452, 1
      %v1455 = vor.u32 %v1450, %v1454
      %v1457 = vshll.u32 %v1345, 16
      %v1459 = vrot.slane %v1457, 1
      %v1460 = vsel %vm439, %v1455, %v1459
      %v1462 = vshrl.u32 %v1298, 16
      %v1464 = vshll.u32 %v1298, 16
      %v1466 = vrot.slane %v1464, 1
      %v1467 = vor.u32 %v1462, %v1466
      %v1469 = vshll.u32 %v1346, 16
      %v1471 = vrot.slane %v1469, 1
      %v1472 = vsel %vm439, %v1467, %v1471
      %v1474 = vshrl.u32 %v1299, 16
      %v1476 = vshll.u32 %v1299, 16
      %v1478 = vrot.slane %v1476, 1
      %v1479 = vor.u32 %v1474, %v1478
      %v1481 = vshll.u32 %v1347, 16
      %v1483 = vrot.slane %v1481, 1
      %v1484 = vsel %vm439, %v1479, %v1483
      %v1486 = vshrl.u32 %v1300, 16
      %v1488 = vshll.u32 %v1300, 16
      %v1490 = vrot.slane %v1488, 1
      %v1491 = vor.u32 %v1486, %v1490
      %v1493 = vshll.u32 %v1348, 16
      %v1495 = vrot.slane %v1493, 1
      %v1496 = vsel %vm439, %v1491, %v1495
      %v1498 = vshrl.u32 %v1301, 16
      %v1500 = vshll.u32 %v1301, 16
      %v1502 = vrot.slane %v1500, 1
      %v1503 = vor.u32 %v1498, %v1502
      %v1505 = vshll.u32 %v1349, 16
      %v1507 = vrot.slane %v1505, 1
      %v1508 = vsel %vm439, %v1503, %v1507
      %v1510 = vshrl.u32 %v1302, 16
      %v1512 = vshll.u32 %v1302, 16
      %v1514 = vrot.slane %v1512, 1
      %v1515 = vor.u32 %v1510, %v1514
      %v1517 = vshll.u32 %v1350, 16
      %v1519 = vrot.slane %v1517, 1
      %v1520 = vsel %vm439, %v1515, %v1519
      %v1522 = vshrl.u32 %v1303, 16
      %v1524 = vshll.u32 %v1303, 16
      %v1526 = vrot.slane %v1524, 1
      %v1527 = vor.u32 %v1522, %v1526
      %v1529 = vshll.u32 %v1351, 16
      %v1531 = vrot.slane %v1529, 1
      %v1532 = vsel %vm439, %v1527, %v1531
      %v1534 = vshrl.u32 %v1304, 16
      %v1536 = vshll.u32 %v1304, 16
      %v1538 = vrot.slane %v1536, 1
      %v1539 = vor.u32 %v1534, %v1538
      %v1541 = vshll.u32 %v1352, 16
      %v1543 = vrot.slane %v1541, 1
      %v1544 = vsel %vm439, %v1539, %v1543
      %1545 = vrot.lane.b32.xlu0 %v1364, 4
      %v1546 = vpop.permute.xlu0 %1545
      %1547 = vrot.lane.b32.xlu0 %v1376, 4
      %v1548 = vpop.permute.xlu0 %1547
      %1549 = vrot.lane.b32.xlu0 %v1388, 4
      %v1550 = vpop.permute.xlu0 %1549
      %1551 = vrot.lane.b32.xlu0 %v1400, 4
      %v1552 = vpop.permute.xlu0 %1551
      %1553 = vrot.lane.b32.xlu0 %v1412, 4
      %v1554 = vpop.permute.xlu0 %1553
      %1555 = vrot.lane.b32.xlu0 %v1424, 4
      %v1556 = vpop.permute.xlu0 %1555
      %1557 = vrot.lane.b32.xlu0 %v1436, 4
      %v1558 = vpop.permute.xlu0 %1557
      %1559 = vrot.lane.b32.xlu0 %v1448, 4
      %v1560 = vpop.permute.xlu0 %1559
      %1561 = vrot.lane.b32.xlu0 %v1460, 4
      %v1562 = vpop.permute.xlu0 %1561
      %1563 = vrot.lane.b32.xlu0 %v1472, 4
      %v1564 = vpop.permute.xlu0 %1563
      %1565 = vrot.lane.b32.xlu0 %v1484, 4
      %v1566 = vpop.permute.xlu0 %1565
      %1567 = vrot.lane.b32.xlu0 %v1496, 4
      %v1568 = vpop.permute.xlu0 %1567
      %1569 = vrot.lane.b32.xlu0 %v1508, 4
      %v1570 = vpop.permute.xlu0 %1569
      %1571 = vrot.lane.b32.xlu0 %v1520, 4
      %v1572 = vpop.permute.xlu0 %1571
      %1573 = vrot.lane.b32.xlu0 %v1532, 4
      %v1574 = vpop.permute.xlu0 %1573
      %1575 = vrot.lane.b32.xlu0 %v1544, 4
      %v1576 = vpop.permute.xlu0 %1575
      %v1593 = vunpack.c.l.b16 %v1209
      %v1594 = vunpack.c.l.b16 %v1210
      %v1595 = vunpack.c.l.b16 %v1211
      %v1596 = vunpack.c.l.b16 %v1212
      %v1597 = vunpack.c.l.b16 %v1213
      %v1598 = vunpack.c.l.b16 %v1214
      %v1599 = vunpack.c.l.b16 %v1215
      %v1600 = vunpack.c.l.b16 %v1216
      %v1601 = vunpack.c.l.b16 %v1217
      %v1602 = vunpack.c.l.b16 %v1218
      %v1603 = vunpack.c.l.b16 %v1219
      %v1604 = vunpack.c.l.b16 %v1220
      %v1605 = vunpack.c.l.b16 %v1221
      %v1606 = vunpack.c.l.b16 %v1222
      %v1607 = vunpack.c.l.b16 %v1223
      %v1608 = vunpack.c.l.b16 %v1224
      %v1609 = vpack.c.b16 %v1258, %v1593
      %v1610 = vpack.c.b16 %v1260, %v1594
      %v1611 = vpack.c.b16 %v1262, %v1595
      %v1612 = vpack.c.b16 %v1264, %v1596
      %v1613 = vpack.c.b16 %v1266, %v1597
      %v1614 = vpack.c.b16 %v1268, %v1598
      %v1615 = vpack.c.b16 %v1270, %v1599
      %v1616 = vpack.c.b16 %v1272, %v1600
      %v1617 = vpack.c.b16 %v1274, %v1601
      %v1618 = vpack.c.b16 %v1276, %v1602
      %v1619 = vpack.c.b16 %v1278, %v1603
      %v1620 = vpack.c.b16 %v1280, %v1604
      %v1621 = vpack.c.b16 %v1282, %v1605
      %v1622 = vpack.c.b16 %v1284, %v1606
      %v1623 = vpack.c.b16 %v1286, %v1607
      %v1624 = vpack.c.b16 %v1288, %v1608
      %v1625 = vrot.slane %v1609, 1
      %v1626 = vrot.slane %v1337, 1
      %v1627 = vsel %vm712, %v1625, %v1626
      %v1628 = vrot.slane %v1610, 1
      %v1629 = vrot.slane %v1338, 1
      %v1630 = vsel %vm712, %v1628, %v1629
      %v1631 = vrot.slane %v1611, 1
      %v1632 = vrot.slane %v1339, 1
      %v1633 = vsel %vm712, %v1631, %v1632
      %v1634 = vrot.slane %v1612, 1
      %v1635 = vrot.slane %v1340, 1
      %v1636 = vsel %vm712, %v1634, %v1635
      %v1637 = vrot.slane %v1613, 1
      %v1638 = vrot.slane %v1341, 1
      %v1639 = vsel %vm712, %v1637, %v1638
      %v1640 = vrot.slane %v1614, 1
      %v1641 = vrot.slane %v1342, 1
      %v1642 = vsel %vm712, %v1640, %v1641
      %v1643 = vrot.slane %v1615, 1
      %v1644 = vrot.slane %v1343, 1
      %v1645 = vsel %vm712, %v1643, %v1644
      %v1646 = vrot.slane %v1616, 1
      %v1647 = vrot.slane %v1344, 1
      %v1648 = vsel %vm712, %v1646, %v1647
      %v1649 = vrot.slane %v1617, 1
      %v1650 = vrot.slane %v1345, 1
      %v1651 = vsel %vm712, %v1649, %v1650
      %v1652 = vrot.slane %v1618, 1
      %v1653 = vrot.slane %v1346, 1
      %v1654 = vsel %vm712, %v1652, %v1653
      %v1655 = vrot.slane %v1619, 1
      %v1656 = vrot.slane %v1347, 1
      %v1657 = vsel %vm712, %v1655, %v1656
      %v1658 = vrot.slane %v1620, 1
      %v1659 = vrot.slane %v1348, 1
      %v1660 = vsel %vm712, %v1658, %v1659
      %v1661 = vrot.slane %v1621, 1
      %v1662 = vrot.slane %v1349, 1
      %v1663 = vsel %vm712, %v1661, %v1662
      %v1664 = vrot.slane %v1622, 1
      %v1665 = vrot.slane %v1350, 1
      %v1666 = vsel %vm712, %v1664, %v1665
      %v1667 = vrot.slane %v1623, 1
      %v1668 = vrot.slane %v1351, 1
      %v1669 = vsel %vm712, %v1667, %v1668
      %v1670 = vrot.slane %v1624, 1
      %v1671 = vrot.slane %v1352, 1
      %v1672 = vsel %vm712, %v1670, %v1671
      %1673 = vrot.lane.b32.xlu0 %v1627, 8
      %v1674 = vpop.permute.xlu0 %1673
      %1675 = vrot.lane.b32.xlu0 %v1630, 8
      %v1676 = vpop.permute.xlu0 %1675
      %1677 = vrot.lane.b32.xlu0 %v1633, 8
      %v1678 = vpop.permute.xlu0 %1677
      %1679 = vrot.lane.b32.xlu0 %v1636, 8
      %v1680 = vpop.permute.xlu0 %1679
      %1681 = vrot.lane.b32.xlu0 %v1639, 8
      %v1682 = vpop.permute.xlu0 %1681
      %1683 = vrot.lane.b32.xlu0 %v1642, 8
      %v1684 = vpop.permute.xlu0 %1683
      %1685 = vrot.lane.b32.xlu0 %v1645, 8
      %v1686 = vpop.permute.xlu0 %1685
      %1687 = vrot.lane.b32.xlu0 %v1648, 8
      %v1688 = vpop.permute.xlu0 %1687
      %1689 = vrot.lane.b32.xlu0 %v1651, 8
      %v1690 = vpop.permute.xlu0 %1689
      %1691 = vrot.lane.b32.xlu0 %v1654, 8
      %v1692 = vpop.permute.xlu0 %1691
      %1693 = vrot.lane.b32.xlu0 %v1657, 8
      %v1694 = vpop.permute.xlu0 %1693
      %1695 = vrot.lane.b32.xlu0 %v1660, 8
      %v1696 = vpop.permute.xlu0 %1695
      %1697 = vrot.lane.b32.xlu0 %v1663, 8
      %v1698 = vpop.permute.xlu0 %1697
      %1699 = vrot.lane.b32.xlu0 %v1666, 8
      %v1700 = vpop.permute.xlu0 %1699
      %1701 = vrot.lane.b32.xlu0 %v1669, 8
      %v1702 = vpop.permute.xlu0 %1701
      %1703 = vrot.lane.b32.xlu0 %v1672, 8
      %v1704 = vpop.permute.xlu0 %1703
      %v1706 = vsel %vm793, %v1289, %v1546
      %v1708 = vsel %vm793, %v1290, %v1548
      %v1710 = vsel %vm793, %v1291, %v1550
      %v1712 = vsel %vm793, %v1292, %v1552
      %v1714 = vsel %vm793, %v1293, %v1554
      %v1716 = vsel %vm793, %v1294, %v1556
      %v1718 = vsel %vm793, %v1295, %v1558
      %v1720 = vsel %vm793, %v1296, %v1560
      %v1722 = vsel %vm793, %v1297, %v1562
      %v1724 = vsel %vm793, %v1298, %v1564
      %v1726 = vsel %vm793, %v1299, %v1566
      %v1728 = vsel %vm793, %v1300, %v1568
      %v1730 = vsel %vm793, %v1301, %v1570
      %v1732 = vsel %vm793, %v1302, %v1572
      %v1734 = vsel %vm793, %v1303, %v1574
      %v1736 = vsel %vm793, %v1304, %v1576
      %v1738 = vsel %vm826, %v1706, %v1674
      %v1740 = vsel %vm826, %v1708, %v1676
      %v1742 = vsel %vm826, %v1710, %v1678
      %v1744 = vsel %vm826, %v1712, %v1680
      %v1746 = vsel %vm826, %v1714, %v1682
      %v1748 = vsel %vm826, %v1716, %v1684
      %v1750 = vsel %vm826, %v1718, %v1686
      %v1752 = vsel %vm826, %v1720, %v1688
      %v1754 = vsel %vm826, %v1722, %v1690
      %v1756 = vsel %vm826, %v1724, %v1692
      %v1758 = vsel %vm826, %v1726, %v1694
      %v1760 = vsel %vm826, %v1728, %v1696
      %v1762 = vsel %vm826, %v1730, %v1698
      %v1764 = vsel %vm826, %v1732, %v1700
      %v1766 = vsel %vm826, %v1734, %v1702
      %v1768 = vsel %vm826, %v1736, %v1704
      %v1769 = vld [vmem:[%s206] sm:$0xff]
      %v1770 = vld [vmem:[%s206 + $0x8] sm:$0xff]
      %v1771 = vld [vmem:[%s206 + $0x10] sm:$0xff]
      %v1772 = vld [vmem:[%s206 + $0x18] sm:$0xff]
      %v1773 = vld [vmem:[%s206 + $0x20] sm:$0xff]
      %v1774 = vld [vmem:[%s206 + $0x28] sm:$0xff]
      %v1775 = vld [vmem:[%s206 + $0x30] sm:$0xff]
      %v1776 = vld [vmem:[%s206 + $0x38] sm:$0xff]
      %v1777 = vld [vmem:[%s206 + $0x40] sm:$0xff]
      %v1778 = vld [vmem:[%s206 + $0x48] sm:$0xff]
      %v1779 = vld [vmem:[%s206 + $0x50] sm:$0xff]
      %v1780 = vld [vmem:[%s206 + $0x58] sm:$0xff]
      %v1781 = vld [vmem:[%s206 + $0x60] sm:$0xff]
      %v1782 = vld [vmem:[%s206 + $0x68] sm:$0xff]
      %v1783 = vld [vmem:[%s206 + $0x70] sm:$0xff]
      %v1784 = vld [vmem:[%s206 + $0x78] sm:$0xff]
      %v1785 = vld [vmem:[%s206 + $0x80] sm:$0xff]
      %v1786 = vld [vmem:[%s206 + $0x88] sm:$0xff]
      %v1787 = vld [vmem:[%s206 + $0x90] sm:$0xff]
      %v1788 = vld [vmem:[%s206 + $0x98] sm:$0xff]
      %v1789 = vld [vmem:[%s206 + $0xa0] sm:$0xff]
      %v1790 = vld [vmem:[%s206 + $0xa8] sm:$0xff]
      %v1791 = vld [vmem:[%s206 + $0xb0] sm:$0xff]
      %v1792 = vld [vmem:[%s206 + $0xb8] sm:$0xff]
      %v1793 = vld [vmem:[%s206 + $0xc0] sm:$0xff]
      %v1794 = vld [vmem:[%s206 + $0xc8] sm:$0xff]
      %v1795 = vld [vmem:[%s206 + $0xd0] sm:$0xff]
      %v1796 = vld [vmem:[%s206 + $0xd8] sm:$0xff]
      %v1797 = vld [vmem:[%s206 + $0xe0] sm:$0xff]
      %v1798 = vld [vmem:[%s206 + $0xe8] sm:$0xff]
      %v1799 = vld [vmem:[%s206 + $0xf0] sm:$0xff]
      %v1800 = vld [vmem:[%s206 + $0xf8] sm:$0xff]
      %s1801 = scalar_lea.vmem %s1, 8
      %v1802 = vld [vmem:[%s1801] sm:$0xf]
      %v1803 = vld [vmem:[%s1801 + $0x4] sm:$0x3]
      %v1806 = vunpack.c.l.b16 %v1802
      %v1807 = vunpack.c.l.b16 %v1803
      %v1808 = vpack.c.b16 %v1807, %v1806
      %v1809 = vsel %vm898, %v1738, 0
      %v1811 = vsel %vm898, %v1740, 0
      %v1813 = vsel %vm898, %v1742, 0
      %v1815 = vsel %vm898, %v1744, 0
      %v1817 = vsel %vm898, %v1746, 0
      %v1819 = vsel %vm898, %v1748, 0
      %v1821 = vsel %vm898, %v1750, 0
      %v1823 = vsel %vm898, %v1752, 0
      %v1825 = vsel %vm898, %v1754, 0
      %v1827 = vsel %vm898, %v1756, 0
      %v1829 = vsel %vm898, %v1758, 0
      %v1831 = vsel %vm898, %v1760, 0
      %v1833 = vsel %vm898, %v1762, 0
      %v1835 = vsel %vm898, %v1764, 0
      %v1837 = vsel %vm898, %v1766, 0
      %v1839 = vsel %vm898, %v1768, 0
      %v1842 = vsel %vm931, %v1808, 0
      %1844 = vmatprep.subr.bf16.mxu0 0
      %1845 = vmatpush1.bf16.msra.mxu0 %v1842
      %1846 = vmatprep.subr.bf16.mxu0 0
      %1847 = vmatpush1.bf16.msra.mxu0 0
      %1848 = vmatprep.subr.bf16.mxu0 0
      %1849 = vmatpush1.bf16.msra.mxu0 0
      %1850 = vmatprep.subr.bf16.mxu0 0
      %1851 = vmatpush1.bf16.msra.mxu0 0
      %1852 = vmatprep.subr.bf16.mxu0 0
      %1853 = vmatpush1.bf16.msra.mxu0 0
      %1854 = vmatprep.subr.bf16.mxu0 0
      %1855 = vmatpush1.bf16.msra.mxu0 0
      %1856 = vmatprep.subr.bf16.mxu0 0
      %1857 = vmatpush1.bf16.msra.mxu0 0
      %1858 = vmatprep.subr.bf16.mxu0 0
      %1859 = vmatpush1.bf16.msra.mxu0 0
      %1860 = vmatprep.subr.bf16.mxu0 0
      %1861 = vmatpush1.bf16.msra.mxu0 0
      %1862 = vmatprep.subr.bf16.mxu0 0
      %1863 = vmatpush1.bf16.msra.mxu0 0
      %1864 = vmatprep.subr.bf16.mxu0 0
      %1865 = vmatpush1.bf16.msra.mxu0 0
      %1866 = vmatprep.subr.bf16.mxu0 0
      %1867 = vmatpush1.bf16.msra.mxu0 0
      %1868 = vmatprep.subr.bf16.mxu0 0
      %1869 = vmatpush1.bf16.msra.mxu0 0
      %1870 = vmatprep.subr.bf16.mxu0 0
      %1871 = vmatpush1.bf16.msra.mxu0 0
      %1872 = vmatprep.subr.bf16.mxu0 0
      %1873 = vmatpush1.bf16.msra.mxu0 0
      %1874 = vmatprep.subr.bf16.mxu0 0
      %1875 = vmatpush1.bf16.msra.mxu0 0
      %1876 = vmatprep.mubr.bf16.mxu0 0
      %1877 = vmatmul.mubr.bf16.gmra.mrb[0].mxu0 %v1809
      %v1878 = vpop.f32.mrb[0].mxu0
      %v1879 = vadd.f32 0.0, %v1878
      %v1880 = vpop.f32.mrb[0].mxu0
      %v1881 = vpop.f32.mrb[0].mxu0
      %v1882 = vadd.f32 0.0, %v1881
      %v1883 = vpop.f32.mrb[0].mxu0
      %1884 = vmatprep.mubr.bf16.mxu0 0
      %1885 = vmatmul.mubr.bf16.gmra.mrb[0].mxu0 %v1811
      %v1886 = vpop.f32.mrb[0].mxu0
      %v1887 = vadd.f32 0.0, %v1886
      %v1888 = vpop.f32.mrb[0].mxu0
      %v1889 = vpop.f32.mrb[0].mxu0
      %v1890 = vadd.f32 0.0, %v1889
      %v1891 = vpop.f32.mrb[0].mxu0
      %1892 = vmatprep.mubr.bf16.mxu0 0
      %1893 = vmatmul.mubr.bf16.gmra.mrb[0].mxu0 %v1813
      %v1894 = vpop.f32.mrb[0].mxu0
      %v1895 = vadd.f32 0.0, %v1894
      %v1896 = vpop.f32.mrb[0].mxu0
      %v1897 = vpop.f32.mrb[0].mxu0
      %v1898 = vadd.f32 0.0, %v1897
      %v1899 = vpop.f32.mrb[0].mxu0
      %1900 = vmatprep.mubr.bf16.mxu0 0
      %1901 = vmatmul.mubr.bf16.gmra.mrb[0].mxu0 %v1815
      %v1902 = vpop.f32.mrb[0].mxu0
      %v1903 = vadd.f32 0.0, %v1902
      %v1904 = vpop.f32.mrb[0].mxu0
      %v1905 = vpop.f32.mrb[0].mxu0
      %v1906 = vadd.f32 0.0, %v1905
      %v1907 = vpop.f32.mrb[0].mxu0
      %1908 = vmatprep.mubr.bf16.mxu0 0
      %1909 = vmatmul.mubr.bf16.gmra.mrb[0].mxu0 %v1817
      %v1910 = vpop.f32.mrb[0].mxu0
      %v1911 = vadd.f32 0.0, %v1910
      %v1912 = vpop.f32.mrb[0].mxu0
      %v1913 = vpop.f32.mrb[0].mxu0
      %v1914 = vadd.f32 0.0, %v1913
      %v1915 = vpop.f32.mrb[0].mxu0
      %1916 = vmatprep.mubr.bf16.mxu0 0
      %1917 = vmatmul.mubr.bf16.gmra.mrb[0].mxu0 %v1819
      %v1918 = vpop.f32.mrb[0].mxu0
      %v1919 = vadd.f32 0.0, %v1918
      %v1920 = vpop.f32.mrb[0].mxu0
      %v1921 = vpop.f32.mrb[0].mxu0
      %v1922 = vadd.f32 0.0, %v1921
      %v1923 = vpop.f32.mrb[0].mxu0
      %1924 = vmatprep.mubr.bf16.mxu0 0
      %1925 = vmatmul.mubr.bf16.gmra.mrb[0].mxu0 %v1821
      %v1926 = vpop.f32.mrb[0].mxu0
      %v1927 = vadd.f32 0.0, %v1926
      %v1928 = vpop.f32.mrb[0].mxu0
      %v1929 = vpop.f32.mrb[0].mxu0
      %v1930 = vadd.f32 0.0, %v1929
      %v1931 = vpop.f32.mrb[0].mxu0
      %1932 = vmatprep.mubr.bf16.mxu0 0
      %1933 = vmatmul.mubr.bf16.gmra.mrb[0].mxu0 %v1823
      %v1934 = vpop.f32.mrb[0].mxu0
      %v1935 = vadd.f32 0.0, %v1934
      %v1936 = vpop.f32.mrb[0].mxu0
      %v1937 = vpop.f32.mrb[0].mxu0
      %v1938 = vadd.f32 0.0, %v1937
      %v1939 = vpop.f32.mrb[0].mxu0
      %1940 = vmatprep.mubr.bf16.mxu0 0
      %1941 = vmatmul.mubr.bf16.gmra.mrb[0].mxu0 %v1825
      %v1942 = vpop.f32.mrb[0].mxu0
      %v1943 = vadd.f32 0.0, %v1942
      %v1944 = vpop.f32.mrb[0].mxu0
      %v1945 = vpop.f32.mrb[0].mxu0
      %v1946 = vadd.f32 0.0, %v1945
      %v1947 = vpop.f32.mrb[0].mxu0
      %1948 = vmatprep.mubr.bf16.mxu0 0
      %1949 = vmatmul.mubr.bf16.gmra.mrb[0].mxu0 %v1827
      %v1950 = vpop.f32.mrb[0].mxu0
      %v1951 = vadd.f32 0.0, %v1950
      %v1952 = vpop.f32.mrb[0].mxu0
      %v1953 = vpop.f32.mrb[0].mxu0
      %v1954 = vadd.f32 0.0, %v1953
      %v1955 = vpop.f32.mrb[0].mxu0
      %1956 = vmatprep.mubr.bf16.mxu0 0
      %1957 = vmatmul.mubr.bf16.gmra.mrb[0].mxu0 %v1829
      %v1958 = vpop.f32.mrb[0].mxu0
      %v1959 = vadd.f32 0.0, %v1958
      %v1960 = vpop.f32.mrb[0].mxu0
      %v1961 = vpop.f32.mrb[0].mxu0
      %v1962 = vadd.f32 0.0, %v1961
      %v1963 = vpop.f32.mrb[0].mxu0
      %1964 = vmatprep.mubr.bf16.mxu0 0
      %1965 = vmatmul.mubr.bf16.gmra.mrb[0].mxu0 %v1831
      %v1966 = vpop.f32.mrb[0].mxu0
      %v1967 = vadd.f32 0.0, %v1966
      %v1968 = vpop.f32.mrb[0].mxu0
      %v1969 = vpop.f32.mrb[0].mxu0
      %v1970 = vadd.f32 0.0, %v1969
      %v1971 = vpop.f32.mrb[0].mxu0
      %1972 = vmatprep.mubr.bf16.mxu0 0
      %1973 = vmatmul.mubr.bf16.gmra.mrb[0].mxu0 %v1833
      %v1974 = vpop.f32.mrb[0].mxu0
      %v1975 = vadd.f32 0.0, %v1974
      %v1976 = vpop.f32.mrb[0].mxu0
      %v1977 = vpop.f32.mrb[0].mxu0
      %v1978 = vadd.f32 0.0, %v1977
      %v1979 = vpop.f32.mrb[0].mxu0
      %1980 = vmatprep.mubr.bf16.mxu0 0
      %1981 = vmatmul.mubr.bf16.gmra.mrb[0].mxu0 %v1835
      %v1982 = vpop.f32.mrb[0].mxu0
      %v1983 = vadd.f32 0.0, %v1982
      %v1984 = vpop.f32.mrb[0].mxu0
      %v1985 = vpop.f32.mrb[0].mxu0
      %v1986 = vadd.f32 0.0, %v1985
      %v1987 = vpop.f32.mrb[0].mxu0
      %1988 = vmatprep.mubr.bf16.mxu0 0
      %1989 = vmatmul.mubr.bf16.gmra.mrb[0].mxu0 %v1837
      %v1990 = vpop.f32.mrb[0].mxu0
      %v1991 = vadd.f32 0.0, %v1990
      %v1992 = vpop.f32.mrb[0].mxu0
      %v1993 = vpop.f32.mrb[0].mxu0
      %v1994 = vadd.f32 0.0, %v1993
      %v1995 = vpop.f32.mrb[0].mxu0
      %1996 = vmatprep.mubr.bf16.mxu0 0
      %1997 = vmatmul.mubr.bf16.gmra.mrb[0].mxu0 %v1839
      %v1998 = vpop.f32.mrb[0].mxu0
      %v1999 = vadd.f32 0.0, %v1998
      %v2000 = vpop.f32.mrb[0].mxu0
      %v2001 = vpop.f32.mrb[0].mxu0
      %v2002 = vadd.f32 0.0, %v2001
      %v2003 = vpop.f32.mrb[0].mxu0
      %2004 = vdwg.mxu0
      %v2005 = vadd.f32 %v1769, %v1879
      %v2006 = vadd.f32 %v1770, %v1882
      %v2007 = vadd.f32 %v1771, %v1887
      %v2008 = vadd.f32 %v1772, %v1890
      %v2009 = vadd.f32 %v1773, %v1895
      %v2010 = vadd.f32 %v1774, %v1898
      %v2011 = vadd.f32 %v1775, %v1903
      %v2012 = vadd.f32 %v1776, %v1906
      %v2013 = vadd.f32 %v1777, %v1911
      %v2014 = vadd.f32 %v1778, %v1914
      %v2015 = vadd.f32 %v1779, %v1919
      %v2016 = vadd.f32 %v1780, %v1922
      %v2017 = vadd.f32 %v1781, %v1927
      %v2018 = vadd.f32 %v1782, %v1930
      %v2019 = vadd.f32 %v1783, %v1935
      %v2020 = vadd.f32 %v1784, %v1938
      %v2021 = vadd.f32 %v1785, %v1943
      %v2022 = vadd.f32 %v1786, %v1946
      %v2023 = vadd.f32 %v1787, %v1951
      %v2024 = vadd.f32 %v1788, %v1954
      %v2025 = vadd.f32 %v1789, %v1959
      %v2026 = vadd.f32 %v1790, %v1962
      %v2027 = vadd.f32 %v1791, %v1967
      %v2028 = vadd.f32 %v1792, %v1970
      %v2029 = vadd.f32 %v1793, %v1975
      %v2030 = vadd.f32 %v1794, %v1978
      %v2031 = vadd.f32 %v1795, %v1983
      %v2032 = vadd.f32 %v1796, %v1986
      %v2033 = vadd.f32 %v1797, %v1991
      %v2034 = vadd.f32 %v1798, %v1994
      %v2035 = vadd.f32 %v1799, %v1999
      %v2036 = vadd.f32 %v1800, %v2002
      %2037 = vst [vmem:[%s206] sm:$0xff] %v2005
      %2038 = vst [vmem:[%s206 + $0x8] sm:$0xff] %v2006
      %2039 = vst [vmem:[%s206 + $0x10] sm:$0xff] %v2007
      %2040 = vst [vmem:[%s206 + $0x18] sm:$0xff] %v2008
      %2041 = vst [vmem:[%s206 + $0x20] sm:$0xff] %v2009
      %2042 = vst [vmem:[%s206 + $0x28] sm:$0xff] %v2010
      %2043 = vst [vmem:[%s206 + $0x30] sm:$0xff] %v2011
      %2044 = vst [vmem:[%s206 + $0x38] sm:$0xff] %v2012
      %2045 = vst [vmem:[%s206 + $0x40] sm:$0xff] %v2013
      %2046 = vst [vmem:[%s206 + $0x48] sm:$0xff] %v2014
      %2047 = vst [vmem:[%s206 + $0x50] sm:$0xff] %v2015
      %2048 = vst [vmem:[%s206 + $0x58] sm:$0xff] %v2016
      %2049 = vst [vmem:[%s206 + $0x60] sm:$0xff] %v2017
      %2050 = vst [vmem:[%s206 + $0x68] sm:$0xff] %v2018
      %2051 = vst [vmem:[%s206 + $0x70] sm:$0xff] %v2019
      %2052 = vst [vmem:[%s206 + $0x78] sm:$0xff] %v2020
      %2053 = vst [vmem:[%s206 + $0x80] sm:$0xff] %v2021
      %2054 = vst [vmem:[%s206 + $0x88] sm:$0xff] %v2022
      %2055 = vst [vmem:[%s206 + $0x90] sm:$0xff] %v2023
      %2056 = vst [vmem:[%s206 + $0x98] sm:$0xff] %v2024
      %2057 = vst [vmem:[%s206 + $0xa0] sm:$0xff] %v2025
      %2058 = vst [vmem:[%s206 + $0xa8] sm:$0xff] %v2026
      %2059 = vst [vmem:[%s206 + $0xb0] sm:$0xff] %v2027
      %2060 = vst [vmem:[%s206 + $0xb8] sm:$0xff] %v2028
      %2061 = vst [vmem:[%s206 + $0xc0] sm:$0xff] %v2029
      %2062 = vst [vmem:[%s206 + $0xc8] sm:$0xff] %v2030
      %2063 = vst [vmem:[%s206 + $0xd0] sm:$0xff] %v2031
      %2064 = vst [vmem:[%s206 + $0xd8] sm:$0xff] %v2032
      %2065 = vst [vmem:[%s206 + $0xe0] sm:$0xff] %v2033
      %2066 = vst [vmem:[%s206 + $0xe8] sm:$0xff] %v2034
      %2067 = vst [vmem:[%s206 + $0xf0] sm:$0xff] %v2035
      %2068 = vst [vmem:[%s206 + $0xf8] sm:$0xff] %v2036
      %s2069 = scalar_lea.vmem %s197, 24
      %v2070 = vld [vmem:[%s2069] sm:$0xf]
      %v2071 = vld [vmem:[%s2069 + $0x4] sm:$0xf]
      %v2072 = vld [vmem:[%s2069 + $0xc] sm:$0xf]
      %v2073 = vld [vmem:[%s2069 + $0x10] sm:$0xf]
      %v2074 = vld [vmem:[%s2069 + $0x18] sm:$0xf]
      %v2075 = vld [vmem:[%s2069 + $0x1c] sm:$0xf]
      %v2076 = vld [vmem:[%s2069 + $0x24] sm:$0xf]
      %v2077 = vld [vmem:[%s2069 + $0x28] sm:$0xf]
      %v2078 = vld [vmem:[%s2069 + $0x30] sm:$0xf]
      %v2079 = vld [vmem:[%s2069 + $0x34] sm:$0xf]
      %v2080 = vld [vmem:[%s2069 + $0x3c] sm:$0xf]
      %v2081 = vld [vmem:[%s2069 + $0x40] sm:$0xf]
      %v2082 = vld [vmem:[%s2069 + $0x48] sm:$0xf]
      %v2083 = vld [vmem:[%s2069 + $0x4c] sm:$0xf]
      %v2084 = vld [vmem:[%s2069 + $0x54] sm:$0xf]
      %v2085 = vld [vmem:[%s2069 + $0x58] sm:$0xf]
      %v2086 = vld [vmem:[%s2069 + $0x60] sm:$0xf]
      %v2087 = vld [vmem:[%s2069 + $0x64] sm:$0xf]
      %v2088 = vld [vmem:[%s2069 + $0x6c] sm:$0xf]
      %v2089 = vld [vmem:[%s2069 + $0x70] sm:$0xf]
      %v2090 = vld [vmem:[%s2069 + $0x78] sm:$0xf]
      %v2091 = vld [vmem:[%s2069 + $0x7c] sm:$0xf]
      %v2092 = vld [vmem:[%s2069 + $0x84] sm:$0xf]
      %v2093 = vld [vmem:[%s2069 + $0x88] sm:$0xf]
      %v2094 = vld [vmem:[%s2069 + $0x90] sm:$0xf]
      %v2095 = vld [vmem:[%s2069 + $0x94] sm:$0xf]
      %v2096 = vld [vmem:[%s2069 + $0x9c] sm:$0xf]
      %v2097 = vld [vmem:[%s2069 + $0xa0] sm:$0xf]
      %v2098 = vld [vmem:[%s2069 + $0xa8] sm:$0xf]
      %v2099 = vld [vmem:[%s2069 + $0xac] sm:$0xf]
      %v2100 = vld [vmem:[%s2069 + $0xb4] sm:$0xf]
      %v2101 = vld [vmem:[%s2069 + $0xb8] sm:$0xf]
      %v2102 = vld [vmem:[%s2069 + $0x8] sm:$0x1]
      %v2103 = vld [vmem:[%s2069 + $0x14] sm:$0x1]
      %v2104 = vld [vmem:[%s2069 + $0x20] sm:$0x1]
      %v2105 = vld [vmem:[%s2069 + $0x2c] sm:$0x1]
      %v2106 = vld [vmem:[%s2069 + $0x38] sm:$0x1]
      %v2107 = vld [vmem:[%s2069 + $0x44] sm:$0x1]
      %v2108 = vld [vmem:[%s2069 + $0x50] sm:$0x1]
      %v2109 = vld [vmem:[%s2069 + $0x5c] sm:$0x1]
      %v2110 = vld [vmem:[%s2069 + $0x68] sm:$0x1]
      %v2111 = vld [vmem:[%s2069 + $0x74] sm:$0x1]
      %v2112 = vld [vmem:[%s2069 + $0x80] sm:$0x1]
      %v2113 = vld [vmem:[%s2069 + $0x8c] sm:$0x1]
      %v2114 = vld [vmem:[%s2069 + $0x98] sm:$0x1]
      %v2115 = vld [vmem:[%s2069 + $0xa4] sm:$0x1]
      %v2116 = vld [vmem:[%s2069 + $0xb0] sm:$0x1]
      %v2117 = vld [vmem:[%s2069 + $0xbc] sm:$0x1]
      %v2118 = vld [vmem:[%s2069] sm:$0xe]
      %v2119 = vld [vmem:[%s2069 + $0xc] sm:$0xe]
      %v2120 = vld [vmem:[%s2069 + $0x18] sm:$0xe]
      %v2121 = vld [vmem:[%s2069 + $0x24] sm:$0xe]
      %v2122 = vld [vmem:[%s2069 + $0x30] sm:$0xe]
      %v2123 = vld [vmem:[%s2069 + $0x3c] sm:$0xe]
      %v2124 = vld [vmem:[%s2069 + $0x48] sm:$0xe]
      %v2125 = vld [vmem:[%s2069 + $0x54] sm:$0xe]
      %v2126 = vld [vmem:[%s2069 + $0x60] sm:$0xe]
      %v2127 = vld [vmem:[%s2069 + $0x6c] sm:$0xe]
      %v2128 = vld [vmem:[%s2069 + $0x78] sm:$0xe]
      %v2129 = vld [vmem:[%s2069 + $0x84] sm:$0xe]
      %v2130 = vld [vmem:[%s2069 + $0x90] sm:$0xe]
      %v2131 = vld [vmem:[%s2069 + $0x9c] sm:$0xe]
      %v2132 = vld [vmem:[%s2069 + $0xa8] sm:$0xe]
      %v2133 = vld [vmem:[%s2069 + $0xb4] sm:$0xe]
      %v2166 = vunpack.c.l.b16 %v2070
      %v2167 = vunpack.c.l.b16 %v2071
      %v2168 = vunpack.c.l.b16 %v2072
      %v2169 = vunpack.c.l.b16 %v2073
      %v2170 = vunpack.c.l.b16 %v2074
      %v2171 = vunpack.c.l.b16 %v2075
      %v2172 = vunpack.c.l.b16 %v2076
      %v2173 = vunpack.c.l.b16 %v2077
      %v2174 = vunpack.c.l.b16 %v2078
      %v2175 = vunpack.c.l.b16 %v2079
      %v2176 = vunpack.c.l.b16 %v2080
      %v2177 = vunpack.c.l.b16 %v2081
      %v2178 = vunpack.c.l.b16 %v2082
      %v2179 = vunpack.c.l.b16 %v2083
      %v2180 = vunpack.c.l.b16 %v2084
      %v2181 = vunpack.c.l.b16 %v2085
      %v2182 = vunpack.c.l.b16 %v2086
      %v2183 = vunpack.c.l.b16 %v2087
      %v2184 = vunpack.c.l.b16 %v2088
      %v2185 = vunpack.c.l.b16 %v2089
      %v2186 = vunpack.c.l.b16 %v2090
      %v2187 = vunpack.c.l.b16 %v2091
      %v2188 = vunpack.c.l.b16 %v2092
      %v2189 = vunpack.c.l.b16 %v2093
      %v2190 = vunpack.c.l.b16 %v2094
      %v2191 = vunpack.c.l.b16 %v2095
      %v2192 = vunpack.c.l.b16 %v2096
      %v2193 = vunpack.c.l.b16 %v2097
      %v2194 = vunpack.c.l.b16 %v2098
      %v2195 = vunpack.c.l.b16 %v2099
      %v2196 = vunpack.c.l.b16 %v2100
      %v2197 = vunpack.c.l.b16 %v2101
      %v2198 = vpack.c.b16 %v2167, %v2166
      %v2199 = vpack.c.b16 %v2169, %v2168
      %v2200 = vpack.c.b16 %v2171, %v2170
      %v2201 = vpack.c.b16 %v2173, %v2172
      %v2202 = vpack.c.b16 %v2175, %v2174
      %v2203 = vpack.c.b16 %v2177, %v2176
      %v2204 = vpack.c.b16 %v2179, %v2178
      %v2205 = vpack.c.b16 %v2181, %v2180
      %v2206 = vpack.c.b16 %v2183, %v2182
      %v2207 = vpack.c.b16 %v2185, %v2184
      %v2208 = vpack.c.b16 %v2187, %v2186
      %v2209 = vpack.c.b16 %v2189, %v2188
      %v2210 = vpack.c.b16 %v2191, %v2190
      %v2211 = vpack.c.b16 %v2193, %v2192
      %v2212 = vpack.c.b16 %v2195, %v2194
      %v2213 = vpack.c.b16 %v2197, %v2196
      %v2230 = vunpack.c.l.b16 %v2102
      %v2231 = vunpack.c.l.b16 %v2103
      %v2232 = vunpack.c.l.b16 %v2104
      %v2233 = vunpack.c.l.b16 %v2105
      %v2234 = vunpack.c.l.b16 %v2106
      %v2235 = vunpack.c.l.b16 %v2107
      %v2236 = vunpack.c.l.b16 %v2108
      %v2237 = vunpack.c.l.b16 %v2109
      %v2238 = vunpack.c.l.b16 %v2110
      %v2239 = vunpack.c.l.b16 %v2111
      %v2240 = vunpack.c.l.b16 %v2112
      %v2241 = vunpack.c.l.b16 %v2113
      %v2242 = vunpack.c.l.b16 %v2114
      %v2243 = vunpack.c.l.b16 %v2115
      %v2244 = vunpack.c.l.b16 %v2116
      %v2245 = vunpack.c.l.b16 %v2117
      %v2246 = vpack.c.b16 %v2230, %v2230
      %v2247 = vpack.c.b16 %v2231, %v2231
      %v2248 = vpack.c.b16 %v2232, %v2232
      %v2249 = vpack.c.b16 %v2233, %v2233
      %v2250 = vpack.c.b16 %v2234, %v2234
      %v2251 = vpack.c.b16 %v2235, %v2235
      %v2252 = vpack.c.b16 %v2236, %v2236
      %v2253 = vpack.c.b16 %v2237, %v2237
      %v2254 = vpack.c.b16 %v2238, %v2238
      %v2255 = vpack.c.b16 %v2239, %v2239
      %v2256 = vpack.c.b16 %v2240, %v2240
      %v2257 = vpack.c.b16 %v2241, %v2241
      %v2258 = vpack.c.b16 %v2242, %v2242
      %v2259 = vpack.c.b16 %v2243, %v2243
      %v2260 = vpack.c.b16 %v2244, %v2244
      %v2261 = vpack.c.b16 %v2245, %v2245
      %v2263 = vshrl.u32 %v2198, 16
      %v2265 = vshll.u32 %v2198, 16
      %v2267 = vrot.slane %v2265, 1
      %v2268 = vor.u32 %v2263, %v2267
      %v2270 = vshll.u32 %v2246, 16
      %v2272 = vrot.slane %v2270, 1
      %v2273 = vsel %vm439, %v2268, %v2272
      %v2275 = vshrl.u32 %v2199, 16
      %v2277 = vshll.u32 %v2199, 16
      %v2279 = vrot.slane %v2277, 1
      %v2280 = vor.u32 %v2275, %v2279
      %v2282 = vshll.u32 %v2247, 16
      %v2284 = vrot.slane %v2282, 1
      %v2285 = vsel %vm439, %v2280, %v2284
      %v2287 = vshrl.u32 %v2200, 16
      %v2289 = vshll.u32 %v2200, 16
      %v2291 = vrot.slane %v2289, 1
      %v2292 = vor.u32 %v2287, %v2291
      %v2294 = vshll.u32 %v2248, 16
      %v2296 = vrot.slane %v2294, 1
      %v2297 = vsel %vm439, %v2292, %v2296
      %v2299 = vshrl.u32 %v2201, 16
      %v2301 = vshll.u32 %v2201, 16
      %v2303 = vrot.slane %v2301, 1
      %v2304 = vor.u32 %v2299, %v2303
      %v2306 = vshll.u32 %v2249, 16
      %v2308 = vrot.slane %v2306, 1
      %v2309 = vsel %vm439, %v2304, %v2308
      %v2311 = vshrl.u32 %v2202, 16
      %v2313 = vshll.u32 %v2202, 16
      %v2315 = vrot.slane %v2313, 1
      %v2316 = vor.u32 %v2311, %v2315
      %v2318 = vshll.u32 %v2250, 16
      %v2320 = vrot.slane %v2318, 1
      %v2321 = vsel %vm439, %v2316, %v2320
      %v2323 = vshrl.u32 %v2203, 16
      %v2325 = vshll.u32 %v2203, 16
      %v2327 = vrot.slane %v2325, 1
      %v2328 = vor.u32 %v2323, %v2327
      %v2330 = vshll.u32 %v2251, 16
      %v2332 = vrot.slane %v2330, 1
      %v2333 = vsel %vm439, %v2328, %v2332
      %v2335 = vshrl.u32 %v2204, 16
      %v2337 = vshll.u32 %v2204, 16
      %v2339 = vrot.slane %v2337, 1
      %v2340 = vor.u32 %v2335, %v2339
      %v2342 = vshll.u32 %v2252, 16
      %v2344 = vrot.slane %v2342, 1
      %v2345 = vsel %vm439, %v2340, %v2344
      %v2347 = vshrl.u32 %v2205, 16
      %v2349 = vshll.u32 %v2205, 16
      %v2351 = vrot.slane %v2349, 1
      %v2352 = vor.u32 %v2347, %v2351
      %v2354 = vshll.u32 %v2253, 16
      %v2356 = vrot.slane %v2354, 1
      %v2357 = vsel %vm439, %v2352, %v2356
      %v2359 = vshrl.u32 %v2206, 16
      %v2361 = vshll.u32 %v2206, 16
      %v2363 = vrot.slane %v2361, 1
      %v2364 = vor.u32 %v2359, %v2363
      %v2366 = vshll.u32 %v2254, 16
      %v2368 = vrot.slane %v2366, 1
      %v2369 = vsel %vm439, %v2364, %v2368
      %v2371 = vshrl.u32 %v2207, 16
      %v2373 = vshll.u32 %v2207, 16
      %v2375 = vrot.slane %v2373, 1
      %v2376 = vor.u32 %v2371, %v2375
      %v2378 = vshll.u32 %v2255, 16
      %v2380 = vrot.slane %v2378, 1
      %v2381 = vsel %vm439, %v2376, %v2380
      %v2383 = vshrl.u32 %v2208, 16
      %v2385 = vshll.u32 %v2208, 16
      %v2387 = vrot.slane %v2385, 1
      %v2388 = vor.u32 %v2383, %v2387
      %v2390 = vshll.u32 %v2256, 16
      %v2392 = vrot.slane %v2390, 1
      %v2393 = vsel %vm439, %v2388, %v2392
      %v2395 = vshrl.u32 %v2209, 16
      %v2397 = vshll.u32 %v2209, 16
      %v2399 = vrot.slane %v2397, 1
      %v2400 = vor.u32 %v2395, %v2399
      %v2402 = vshll.u32 %v2257, 16
      %v2404 = vrot.slane %v2402, 1
      %v2405 = vsel %vm439, %v2400, %v2404
      %v2407 = vshrl.u32 %v2210, 16
      %v2409 = vshll.u32 %v2210, 16
      %v2411 = vrot.slane %v2409, 1
      %v2412 = vor.u32 %v2407, %v2411
      %v2414 = vshll.u32 %v2258, 16
      %v2416 = vrot.slane %v2414, 1
      %v2417 = vsel %vm439, %v2412, %v2416
      %v2419 = vshrl.u32 %v2211, 16
      %v2421 = vshll.u32 %v2211, 16
      %v2423 = vrot.slane %v2421, 1
      %v2424 = vor.u32 %v2419, %v2423
      %v2426 = vshll.u32 %v2259, 16
      %v2428 = vrot.slane %v2426, 1
      %v2429 = vsel %vm439, %v2424, %v2428
      %v2431 = vshrl.u32 %v2212, 16
      %v2433 = vshll.u32 %v2212, 16
      %v2435 = vrot.slane %v2433, 1
      %v2436 = vor.u32 %v2431, %v2435
      %v2438 = vshll.u32 %v2260, 16
      %v2440 = vrot.slane %v2438, 1
      %v2441 = vsel %vm439, %v2436, %v2440
      %v2443 = vshrl.u32 %v2213, 16
      %v2445 = vshll.u32 %v2213, 16
      %v2447 = vrot.slane %v2445, 1
      %v2448 = vor.u32 %v2443, %v2447
      %v2450 = vshll.u32 %v2261, 16
      %v2452 = vrot.slane %v2450, 1
      %v2453 = vsel %vm439, %v2448, %v2452
      %2454 = vrot.lane.b32.xlu0 %v2273, 4
      %v2455 = vpop.permute.xlu0 %2454
      %2456 = vrot.lane.b32.xlu0 %v2285, 4
      %v2457 = vpop.permute.xlu0 %2456
      %2458 = vrot.lane.b32.xlu0 %v2297, 4
      %v2459 = vpop.permute.xlu0 %2458
      %2460 = vrot.lane.b32.xlu0 %v2309, 4
      %v2461 = vpop.permute.xlu0 %2460
      %2462 = vrot.lane.b32.xlu0 %v2321, 4
      %v2463 = vpop.permute.xlu0 %2462
      %2464 = vrot.lane.b32.xlu0 %v2333, 4
      %v2465 = vpop.permute.xlu0 %2464
      %2466 = vrot.lane.b32.xlu0 %v2345, 4
      %v2467 = vpop.permute.xlu0 %2466
      %2468 = vrot.lane.b32.xlu0 %v2357, 4
      %v2469 = vpop.permute.xlu0 %2468
      %2470 = vrot.lane.b32.xlu0 %v2369, 4
      %v2471 = vpop.permute.xlu0 %2470
      %2472 = vrot.lane.b32.xlu0 %v2381, 4
      %v2473 = vpop.permute.xlu0 %2472
      %2474 = vrot.lane.b32.xlu0 %v2393, 4
      %v2475 = vpop.permute.xlu0 %2474
      %2476 = vrot.lane.b32.xlu0 %v2405, 4
      %v2477 = vpop.permute.xlu0 %2476
      %2478 = vrot.lane.b32.xlu0 %v2417, 4
      %v2479 = vpop.permute.xlu0 %2478
      %2480 = vrot.lane.b32.xlu0 %v2429, 4
      %v2481 = vpop.permute.xlu0 %2480
      %2482 = vrot.lane.b32.xlu0 %v2441, 4
      %v2483 = vpop.permute.xlu0 %2482
      %2484 = vrot.lane.b32.xlu0 %v2453, 4
      %v2485 = vpop.permute.xlu0 %2484
      %v2502 = vunpack.c.l.b16 %v2118
      %v2503 = vunpack.c.l.b16 %v2119
      %v2504 = vunpack.c.l.b16 %v2120
      %v2505 = vunpack.c.l.b16 %v2121
      %v2506 = vunpack.c.l.b16 %v2122
      %v2507 = vunpack.c.l.b16 %v2123
      %v2508 = vunpack.c.l.b16 %v2124
      %v2509 = vunpack.c.l.b16 %v2125
      %v2510 = vunpack.c.l.b16 %v2126
      %v2511 = vunpack.c.l.b16 %v2127
      %v2512 = vunpack.c.l.b16 %v2128
      %v2513 = vunpack.c.l.b16 %v2129
      %v2514 = vunpack.c.l.b16 %v2130
      %v2515 = vunpack.c.l.b16 %v2131
      %v2516 = vunpack.c.l.b16 %v2132
      %v2517 = vunpack.c.l.b16 %v2133
      %v2518 = vpack.c.b16 %v2167, %v2502
      %v2519 = vpack.c.b16 %v2169, %v2503
      %v2520 = vpack.c.b16 %v2171, %v2504
      %v2521 = vpack.c.b16 %v2173, %v2505
      %v2522 = vpack.c.b16 %v2175, %v2506
      %v2523 = vpack.c.b16 %v2177, %v2507
      %v2524 = vpack.c.b16 %v2179, %v2508
      %v2525 = vpack.c.b16 %v2181, %v2509
      %v2526 = vpack.c.b16 %v2183, %v2510
      %v2527 = vpack.c.b16 %v2185, %v2511
      %v2528 = vpack.c.b16 %v2187, %v2512
      %v2529 = vpack.c.b16 %v2189, %v2513
      %v2530 = vpack.c.b16 %v2191, %v2514
      %v2531 = vpack.c.b16 %v2193, %v2515
      %v2532 = vpack.c.b16 %v2195, %v2516
      %v2533 = vpack.c.b16 %v2197, %v2517
      %v2534 = vrot.slane %v2518, 1
      %v2535 = vrot.slane %v2246, 1
      %v2536 = vsel %vm712, %v2534, %v2535
      %v2537 = vrot.slane %v2519, 1
      %v2538 = vrot.slane %v2247, 1
      %v2539 = vsel %vm712, %v2537, %v2538
      %v2540 = vrot.slane %v2520, 1
      %v2541 = vrot.slane %v2248, 1
      %v2542 = vsel %vm712, %v2540, %v2541
      %v2543 = vrot.slane %v2521, 1
      %v2544 = vrot.slane %v2249, 1
      %v2545 = vsel %vm712, %v2543, %v2544
      %v2546 = vrot.slane %v2522, 1
      %v2547 = vrot.slane %v2250, 1
      %v2548 = vsel %vm712, %v2546, %v2547
      %v2549 = vrot.slane %v2523, 1
      %v2550 = vrot.slane %v2251, 1
      %v2551 = vsel %vm712, %v2549, %v2550
      %v2552 = vrot.slane %v2524, 1
      %v2553 = vrot.slane %v2252, 1
      %v2554 = vsel %vm712, %v2552, %v2553
      %v2555 = vrot.slane %v2525, 1
      %v2556 = vrot.slane %v2253, 1
      %v2557 = vsel %vm712, %v2555, %v2556
      %v2558 = vrot.slane %v2526, 1
      %v2559 = vrot.slane %v2254, 1
      %v2560 = vsel %vm712, %v2558, %v2559
      %v2561 = vrot.slane %v2527, 1
      %v2562 = vrot.slane %v2255, 1
      %v2563 = vsel %vm712, %v2561, %v2562
      %v2564 = vrot.slane %v2528, 1
      %v2565 = vrot.slane %v2256, 1
      %v2566 = vsel %vm712, %v2564, %v2565
      %v2567 = vrot.slane %v2529, 1
      %v2568 = vrot.slane %v2257, 1
      %v2569 = vsel %vm712, %v2567, %v2568
      %v2570 = vrot.slane %v2530, 1
      %v2571 = vrot.slane %v2258, 1
      %v2572 = vsel %vm712, %v2570, %v2571
      %v2573 = vrot.slane %v2531, 1
      %v2574 = vrot.slane %v2259, 1
      %v2575 = vsel %vm712, %v2573, %v2574
      %v2576 = vrot.slane %v2532, 1
      %v2577 = vrot.slane %v2260, 1
      %v2578 = vsel %vm712, %v2576, %v2577
      %v2579 = vrot.slane %v2533, 1
      %v2580 = vrot.slane %v2261, 1
      %v2581 = vsel %vm712, %v2579, %v2580
      %2582 = vrot.lane.b32.xlu0 %v2536, 8
      %v2583 = vpop.permute.xlu0 %2582
      %2584 = vrot.lane.b32.xlu0 %v2539, 8
      %v2585 = vpop.permute.xlu0 %2584
      %2586 = vrot.lane.b32.xlu0 %v2542, 8
      %v2587 = vpop.permute.xlu0 %2586
      %2588 = vrot.lane.b32.xlu0 %v2545, 8
      %v2589 = vpop.permute.xlu0 %2588
      %2590 = vrot.lane.b32.xlu0 %v2548, 8
      %v2591 = vpop.permute.xlu0 %2590
      %2592 = vrot.lane.b32.xlu0 %v2551, 8
      %v2593 = vpop.permute.xlu0 %2592
      %2594 = vrot.lane.b32.xlu0 %v2554, 8
      %v2595 = vpop.permute.xlu0 %2594
      %2596 = vrot.lane.b32.xlu0 %v2557, 8
      %v2597 = vpop.permute.xlu0 %2596
      %2598 = vrot.lane.b32.xlu0 %v2560, 8
      %v2599 = vpop.permute.xlu0 %2598
      %2600 = vrot.lane.b32.xlu0 %v2563, 8
      %v2601 = vpop.permute.xlu0 %2600
      %2602 = vrot.lane.b32.xlu0 %v2566, 8
      %v2603 = vpop.permute.xlu0 %2602
      %2604 = vrot.lane.b32.xlu0 %v2569, 8
      %v2605 = vpop.permute.xlu0 %2604
      %2606 = vrot.lane.b32.xlu0 %v2572, 8
      %v2607 = vpop.permute.xlu0 %2606
      %2608 = vrot.lane.b32.xlu0 %v2575, 8
      %v2609 = vpop.permute.xlu0 %2608
      %2610 = vrot.lane.b32.xlu0 %v2578, 8
      %v2611 = vpop.permute.xlu0 %2610
      %2612 = vrot.lane.b32.xlu0 %v2581, 8
      %v2613 = vpop.permute.xlu0 %2612
      %v2615 = vsel %vm793, %v2198, %v2455
      %v2617 = vsel %vm793, %v2199, %v2457
      %v2619 = vsel %vm793, %v2200, %v2459
      %v2621 = vsel %vm793, %v2201, %v2461
      %v2623 = vsel %vm793, %v2202, %v2463
      %v2625 = vsel %vm793, %v2203, %v2465
      %v2627 = vsel %vm793, %v2204, %v2467
      %v2629 = vsel %vm793, %v2205, %v2469
      %v2631 = vsel %vm793, %v2206, %v2471
      %v2633 = vsel %vm793, %v2207, %v2473
      %v2635 = vsel %vm793, %v2208, %v2475
      %v2637 = vsel %vm793, %v2209, %v2477
      %v2639 = vsel %vm793, %v2210, %v2479
      %v2641 = vsel %vm793, %v2211, %v2481
      %v2643 = vsel %vm793, %v2212, %v2483
      %v2645 = vsel %vm793, %v2213, %v2485
      %v2647 = vsel %vm826, %v2615, %v2583
      %v2649 = vsel %vm826, %v2617, %v2585
      %v2651 = vsel %vm826, %v2619, %v2587
      %v2653 = vsel %vm826, %v2621, %v2589
      %v2655 = vsel %vm826, %v2623, %v2591
      %v2657 = vsel %vm826, %v2625, %v2593
      %v2659 = vsel %vm826, %v2627, %v2595
      %v2661 = vsel %vm826, %v2629, %v2597
      %v2663 = vsel %vm826, %v2631, %v2599
      %v2665 = vsel %vm826, %v2633, %v2601
      %v2667 = vsel %vm826, %v2635, %v2603
      %v2669 = vsel %vm826, %v2637, %v2605
      %v2671 = vsel %vm826, %v2639, %v2607
      %v2673 = vsel %vm826, %v2641, %v2609
      %v2675 = vsel %vm826, %v2643, %v2611
      %v2677 = vsel %vm826, %v2645, %v2613
      %v2678 = vld [vmem:[%s206] sm:$0xff]
      %v2679 = vld [vmem:[%s206 + $0x8] sm:$0xff]
      %v2680 = vld [vmem:[%s206 + $0x10] sm:$0xff]
      %v2681 = vld [vmem:[%s206 + $0x18] sm:$0xff]
      %v2682 = vld [vmem:[%s206 + $0x20] sm:$0xff]
      %v2683 = vld [vmem:[%s206 + $0x28] sm:$0xff]
      %v2684 = vld [vmem:[%s206 + $0x30] sm:$0xff]
      %v2685 = vld [vmem:[%s206 + $0x38] sm:$0xff]
      %v2686 = vld [vmem:[%s206 + $0x40] sm:$0xff]
      %v2687 = vld [vmem:[%s206 + $0x48] sm:$0xff]
      %v2688 = vld [vmem:[%s206 + $0x50] sm:$0xff]
      %v2689 = vld [vmem:[%s206 + $0x58] sm:$0xff]
      %v2690 = vld [vmem:[%s206 + $0x60] sm:$0xff]
      %v2691 = vld [vmem:[%s206 + $0x68] sm:$0xff]
      %v2692 = vld [vmem:[%s206 + $0x70] sm:$0xff]
      %v2693 = vld [vmem:[%s206 + $0x78] sm:$0xff]
      %v2694 = vld [vmem:[%s206 + $0x80] sm:$0xff]
      %v2695 = vld [vmem:[%s206 + $0x88] sm:$0xff]
      %v2696 = vld [vmem:[%s206 + $0x90] sm:$0xff]
      %v2697 = vld [vmem:[%s206 + $0x98] sm:$0xff]
      %v2698 = vld [vmem:[%s206 + $0xa0] sm:$0xff]
      %v2699 = vld [vmem:[%s206 + $0xa8] sm:$0xff]
      %v2700 = vld [vmem:[%s206 + $0xb0] sm:$0xff]
      %v2701 = vld [vmem:[%s206 + $0xb8] sm:$0xff]
      %v2702 = vld [vmem:[%s206 + $0xc0] sm:$0xff]
      %v2703 = vld [vmem:[%s206 + $0xc8] sm:$0xff]
      %v2704 = vld [vmem:[%s206 + $0xd0] sm:$0xff]
      %v2705 = vld [vmem:[%s206 + $0xd8] sm:$0xff]
      %v2706 = vld [vmem:[%s206 + $0xe0] sm:$0xff]
      %v2707 = vld [vmem:[%s206 + $0xe8] sm:$0xff]
      %v2708 = vld [vmem:[%s206 + $0xf0] sm:$0xff]
      %v2709 = vld [vmem:[%s206 + $0xf8] sm:$0xff]
      %s2710 = scalar_lea.vmem %s1, 16
      %v2711 = vld [vmem:[%s2710] sm:$0xf]
      %v2712 = vld [vmem:[%s2710 + $0x4] sm:$0x3]
      %v2715 = vunpack.c.l.b16 %v2711
      %v2716 = vunpack.c.l.b16 %v2712
      %v2717 = vpack.c.b16 %v2716, %v2715
      %v2718 = vsel %vm898, %v2647, 0
      %v2720 = vsel %vm898, %v2649, 0
      %v2722 = vsel %vm898, %v2651, 0
      %v2724 = vsel %vm898, %v2653, 0
      %v2726 = vsel %vm898, %v2655, 0
      %v2728 = vsel %vm898, %v2657, 0
      %v2730 = vsel %vm898, %v2659, 0
      %v2732 = vsel %vm898, %v2661, 0
      %v2734 = vsel %vm898, %v2663, 0
      %v2736 = vsel %vm898, %v2665, 0
      %v2738 = vsel %vm898, %v2667, 0
      %v2740 = vsel %vm898, %v2669, 0
      %v2742 = vsel %vm898, %v2671, 0
      %v2744 = vsel %vm898, %v2673, 0
      %v2746 = vsel %vm898, %v2675, 0
      %v2748 = vsel %vm898, %v2677, 0
      %v2751 = vsel %vm931, %v2717, 0
      %2753 = vmatprep.subr.bf16.mxu0 0
      %2754 = vmatpush1.bf16.msra.mxu0 %v2751
      %2755 = vmatprep.subr.bf16.mxu0 0
      %2756 = vmatpush1.bf16.msra.mxu0 0
      %2757 = vmatprep.subr.bf16.mxu0 0
      %2758 = vmatpush1.bf16.msra.mxu0 0
      %2759 = vmatprep.subr.bf16.mxu0 0
      %2760 = vmatpush1.bf16.msra.mxu0 0
      %2761 = vmatprep.subr.bf16.mxu0 0
      %2762 = vmatpush1.bf16.msra.mxu0 0
      %2763 = vmatprep.subr.bf16.mxu0 0
      %2764 = vmatpush1.bf16.msra.mxu0 0
      %2765 = vmatprep.subr.bf16.mxu0 0
      %2766 = vmatpush1.bf16.msra.mxu0 0
      %2767 = vmatprep.subr.bf16.mxu0 0
      %2768 = vmatpush1.bf16.msra.mxu0 0
      %2769 = vmatprep.subr.bf16.mxu0 0
      %2770 = vmatpush1.bf16.msra.mxu0 0
      %2771 = vmatprep.subr.bf16.mxu0 0
      %2772 = vmatpush1.bf16.msra.mxu0 0
      %2773 = vmatprep.subr.bf16.mxu0 0
      %2774 = vmatpush1.bf16.msra.mxu0 0
      %2775 = vmatprep.subr.bf16.mxu0 0
      %2776 = vmatpush1.bf16.msra.mxu0 0
      %2777 = vmatprep.subr.bf16.mxu0 0
      %2778 = vmatpush1.bf16.msra.mxu0 0
      %2779 = vmatprep.subr.bf16.mxu0 0
      %2780 = vmatpush1.bf16.msra.mxu0 0
      %2781 = vmatprep.subr.bf16.mxu0 0
      %2782 = vmatpush1.bf16.msra.mxu0 0
      %2783 = vmatprep.subr.bf16.mxu0 0
      %2784 = vmatpush1.bf16.msra.mxu0 0
      %2785 = vmatprep.mubr.bf16.mxu0 0
      %2786 = vmatmul.mubr.bf16.gmra.mrb[0].mxu0 %v2718
      %v2787 = vpop.f32.mrb[0].mxu0
      %v2788 = vadd.f32 0.0, %v2787
      %v2789 = vpop.f32.mrb[0].mxu0
      %v2790 = vpop.f32.mrb[0].mxu0
      %v2791 = vadd.f32 0.0, %v2790
      %v2792 = vpop.f32.mrb[0].mxu0
      %2793 = vmatprep.mubr.bf16.mxu0 0
      %2794 = vmatmul.mubr.bf16.gmra.mrb[0].mxu0 %v2720
      %v2795 = vpop.f32.mrb[0].mxu0
      %v2796 = vadd.f32 0.0, %v2795
      %v2797 = vpop.f32.mrb[0].mxu0
      %v2798 = vpop.f32.mrb[0].mxu0
      %v2799 = vadd.f32 0.0, %v2798
      %v2800 = vpop.f32.mrb[0].mxu0
      %2801 = vmatprep.mubr.bf16.mxu0 0
      %2802 = vmatmul.mubr.bf16.gmra.mrb[0].mxu0 %v2722
      %v2803 = vpop.f32.mrb[0].mxu0
      %v2804 = vadd.f32 0.0, %v2803
      %v2805 = vpop.f32.mrb[0].mxu0
      %v2806 = vpop.f32.mrb[0].mxu0
      %v2807 = vadd.f32 0.0, %v2806
      %v2808 = vpop.f32.mrb[0].mxu0
      %2809 = vmatprep.mubr.bf16.mxu0 0
      %2810 = vmatmul.mubr.bf16.gmra.mrb[0].mxu0 %v2724
      %v2811 = vpop.f32.mrb[0].mxu0
      %v2812 = vadd.f32 0.0, %v2811
      %v2813 = vpop.f32.mrb[0].mxu0
      %v2814 = vpop.f32.mrb[0].mxu0
      %v2815 = vadd.f32 0.0, %v2814
      %v2816 = vpop.f32.mrb[0].mxu0
      %2817 = vmatprep.mubr.bf16.mxu0 0
      %2818 = vmatmul.mubr.bf16.gmra.mrb[0].mxu0 %v2726
      %v2819 = vpop.f32.mrb[0].mxu0
      %v2820 = vadd.f32 0.0, %v2819
      %v2821 = vpop.f32.mrb[0].mxu0
      %v2822 = vpop.f32.mrb[0].mxu0
      %v2823 = vadd.f32 0.0, %v2822
      %v2824 = vpop.f32.mrb[0].mxu0
      %2825 = vmatprep.mubr.bf16.mxu0 0
      %2826 = vmatmul.mubr.bf16.gmra.mrb[0].mxu0 %v2728
      %v2827 = vpop.f32.mrb[0].mxu0
      %v2828 = vadd.f32 0.0, %v2827
      %v2829 = vpop.f32.mrb[0].mxu0
      %v2830 = vpop.f32.mrb[0].mxu0
      %v2831 = vadd.f32 0.0, %v2830
      %v2832 = vpop.f32.mrb[0].mxu0
      %2833 = vmatprep.mubr.bf16.mxu0 0
      %2834 = vmatmul.mubr.bf16.gmra.mrb[0].mxu0 %v2730
      %v2835 = vpop.f32.mrb[0].mxu0
      %v2836 = vadd.f32 0.0, %v2835
      %v2837 = vpop.f32.mrb[0].mxu0
      %v2838 = vpop.f32.mrb[0].mxu0
      %v2839 = vadd.f32 0.0, %v2838
      %v2840 = vpop.f32.mrb[0].mxu0
      %2841 = vmatprep.mubr.bf16.mxu0 0
      %2842 = vmatmul.mubr.bf16.gmra.mrb[0].mxu0 %v2732
      %v2843 = vpop.f32.mrb[0].mxu0
      %v2844 = vadd.f32 0.0, %v2843
      %v2845 = vpop.f32.mrb[0].mxu0
      %v2846 = vpop.f32.mrb[0].mxu0
      %v2847 = vadd.f32 0.0, %v2846
      %v2848 = vpop.f32.mrb[0].mxu0
      %2849 = vmatprep.mubr.bf16.mxu0 0
      %2850 = vmatmul.mubr.bf16.gmra.mrb[0].mxu0 %v2734
      %v2851 = vpop.f32.mrb[0].mxu0
      %v2852 = vadd.f32 0.0, %v2851
      %v2853 = vpop.f32.mrb[0].mxu0
      %v2854 = vpop.f32.mrb[0].mxu0
      %v2855 = vadd.f32 0.0, %v2854
      %v2856 = vpop.f32.mrb[0].mxu0
      %2857 = vmatprep.mubr.bf16.mxu0 0
      %2858 = vmatmul.mubr.bf16.gmra.mrb[0].mxu0 %v2736
      %v2859 = vpop.f32.mrb[0].mxu0
      %v2860 = vadd.f32 0.0, %v2859
      %v2861 = vpop.f32.mrb[0].mxu0
      %v2862 = vpop.f32.mrb[0].mxu0
      %v2863 = vadd.f32 0.0, %v2862
      %v2864 = vpop.f32.mrb[0].mxu0
      %2865 = vmatprep.mubr.bf16.mxu0 0
      %2866 = vmatmul.mubr.bf16.gmra.mrb[0].mxu0 %v2738
      %v2867 = vpop.f32.mrb[0].mxu0
      %v2868 = vadd.f32 0.0, %v2867
      %v2869 = vpop.f32.mrb[0].mxu0
      %v2870 = vpop.f32.mrb[0].mxu0
      %v2871 = vadd.f32 0.0, %v2870
      %v2872 = vpop.f32.mrb[0].mxu0
      %2873 = vmatprep.mubr.bf16.mxu0 0
      %2874 = vmatmul.mubr.bf16.gmra.mrb[0].mxu0 %v2740
      %v2875 = vpop.f32.mrb[0].mxu0
      %v2876 = vadd.f32 0.0, %v2875
      %v2877 = vpop.f32.mrb[0].mxu0
      %v2878 = vpop.f32.mrb[0].mxu0
      %v2879 = vadd.f32 0.0, %v2878
      %v2880 = vpop.f32.mrb[0].mxu0
      %2881 = vmatprep.mubr.bf16.mxu0 0
      %2882 = vmatmul.mubr.bf16.gmra.mrb[0].mxu0 %v2742
      %v2883 = vpop.f32.mrb[0].mxu0
      %v2884 = vadd.f32 0.0, %v2883
      %v2885 = vpop.f32.mrb[0].mxu0
      %v2886 = vpop.f32.mrb[0].mxu0
      %v2887 = vadd.f32 0.0, %v2886
      %v2888 = vpop.f32.mrb[0].mxu0
      %2889 = vmatprep.mubr.bf16.mxu0 0
      %2890 = vmatmul.mubr.bf16.gmra.mrb[0].mxu0 %v2744
      %v2891 = vpop.f32.mrb[0].mxu0
      %v2892 = vadd.f32 0.0, %v2891
      %v2893 = vpop.f32.mrb[0].mxu0
      %v2894 = vpop.f32.mrb[0].mxu0
      %v2895 = vadd.f32 0.0, %v2894
      %v2896 = vpop.f32.mrb[0].mxu0
      %2897 = vmatprep.mubr.bf16.mxu0 0
      %2898 = vmatmul.mubr.bf16.gmra.mrb[0].mxu0 %v2746
      %v2899 = vpop.f32.mrb[0].mxu0
      %v2900 = vadd.f32 0.0, %v2899
      %v2901 = vpop.f32.mrb[0].mxu0
      %v2902 = vpop.f32.mrb[0].mxu0
      %v2903 = vadd.f32 0.0, %v2902
      %v2904 = vpop.f32.mrb[0].mxu0
      %2905 = vmatprep.mubr.bf16.mxu0 0
      %2906 = vmatmul.mubr.bf16.gmra.mrb[0].mxu0 %v2748
      %v2907 = vpop.f32.mrb[0].mxu0
      %v2908 = vadd.f32 0.0, %v2907
      %v2909 = vpop.f32.mrb[0].mxu0
      %v2910 = vpop.f32.mrb[0].mxu0
      %v2911 = vadd.f32 0.0, %v2910
      %v2912 = vpop.f32.mrb[0].mxu0
      %2913 = vdwg.mxu0
      %v2914 = vadd.f32 %v2678, %v2788
      %v2915 = vadd.f32 %v2679, %v2791
      %v2916 = vadd.f32 %v2680, %v2796
      %v2917 = vadd.f32 %v2681, %v2799
      %v2918 = vadd.f32 %v2682, %v2804
      %v2919 = vadd.f32 %v2683, %v2807
      %v2920 = vadd.f32 %v2684, %v2812
      %v2921 = vadd.f32 %v2685, %v2815
      %v2922 = vadd.f32 %v2686, %v2820
      %v2923 = vadd.f32 %v2687, %v2823
      %v2924 = vadd.f32 %v2688, %v2828
      %v2925 = vadd.f32 %v2689, %v2831
      %v2926 = vadd.f32 %v2690, %v2836
      %v2927 = vadd.f32 %v2691, %v2839
      %v2928 = vadd.f32 %v2692, %v2844
      %v2929 = vadd.f32 %v2693, %v2847
      %v2930 = vadd.f32 %v2694, %v2852
      %v2931 = vadd.f32 %v2695, %v2855
      %v2932 = vadd.f32 %v2696, %v2860
      %v2933 = vadd.f32 %v2697, %v2863
      %v2934 = vadd.f32 %v2698, %v2868
      %v2935 = vadd.f32 %v2699, %v2871
      %v2936 = vadd.f32 %v2700, %v2876
      %v2937 = vadd.f32 %v2701, %v2879
      %v2938 = vadd.f32 %v2702, %v2884
      %v2939 = vadd.f32 %v2703, %v2887
      %v2940 = vadd.f32 %v2704, %v2892
      %v2941 = vadd.f32 %v2705, %v2895
      %v2942 = vadd.f32 %v2706, %v2900
      %v2943 = vadd.f32 %v2707, %v2903
      %v2944 = vadd.f32 %v2708, %v2908
      %v2945 = vadd.f32 %v2709, %v2911
      %2946 = vst [vmem:[%s206] sm:$0xff] %v2914
      %2947 = vst [vmem:[%s206 + $0x8] sm:$0xff] %v2915
      %2948 = vst [vmem:[%s206 + $0x10] sm:$0xff] %v2916
      %2949 = vst [vmem:[%s206 + $0x18] sm:$0xff] %v2917
      %2950 = vst [vmem:[%s206 + $0x20] sm:$0xff] %v2918
      %2951 = vst [vmem:[%s206 + $0x28] sm:$0xff] %v2919
      %2952 = vst [vmem:[%s206 + $0x30] sm:$0xff] %v2920
      %2953 = vst [vmem:[%s206 + $0x38] sm:$0xff] %v2921
      %2954 = vst [vmem:[%s206 + $0x40] sm:$0xff] %v2922
      %2955 = vst [vmem:[%s206 + $0x48] sm:$0xff] %v2923
      %2956 = vst [vmem:[%s206 + $0x50] sm:$0xff] %v2924
      %2957 = vst [vmem:[%s206 + $0x58] sm:$0xff] %v2925
      %2958 = vst [vmem:[%s206 + $0x60] sm:$0xff] %v2926
      %2959 = vst [vmem:[%s206 + $0x68] sm:$0xff] %v2927
      %2960 = vst [vmem:[%s206 + $0x70] sm:$0xff] %v2928
      %2961 = vst [vmem:[%s206 + $0x78] sm:$0xff] %v2929
      %2962 = vst [vmem:[%s206 + $0x80] sm:$0xff] %v2930
      %2963 = vst [vmem:[%s206 + $0x88] sm:$0xff] %v2931
      %2964 = vst [vmem:[%s206 + $0x90] sm:$0xff] %v2932
      %2965 = vst [vmem:[%s206 + $0x98] sm:$0xff] %v2933
      %2966 = vst [vmem:[%s206 + $0xa0] sm:$0xff] %v2934
      %2967 = vst [vmem:[%s206 + $0xa8] sm:$0xff] %v2935
      %2968 = vst [vmem:[%s206 + $0xb0] sm:$0xff] %v2936
      %2969 = vst [vmem:[%s206 + $0xb8] sm:$0xff] %v2937
      %2970 = vst [vmem:[%s206 + $0xc0] sm:$0xff] %v2938
      %2971 = vst [vmem:[%s206 + $0xc8] sm:$0xff] %v2939
      %2972 = vst [vmem:[%s206 + $0xd0] sm:$0xff] %v2940
      %2973 = vst [vmem:[%s206 + $0xd8] sm:$0xff] %v2941
      %2974 = vst [vmem:[%s206 + $0xe0] sm:$0xff] %v2942
      %2975 = vst [vmem:[%s206 + $0xe8] sm:$0xff] %v2943
      %2976 = vst [vmem:[%s206 + $0xf0] sm:$0xff] %v2944
      %2977 = vst [vmem:[%s206 + $0xf8] sm:$0xff] %v2945
      %v2978 = vld [vmem:[%s206] sm:$0xff]
      %v2979 = vld [vmem:[%s206 + $0x8] sm:$0xff]
      %v2980 = vld [vmem:[%s206 + $0x10] sm:$0xff]
      %v2981 = vld [vmem:[%s206 + $0x18] sm:$0xff]
      %v2982 = vld [vmem:[%s206 + $0x20] sm:$0xff]
      %v2983 = vld [vmem:[%s206 + $0x28] sm:$0xff]
      %v2984 = vld [vmem:[%s206 + $0x30] sm:$0xff]
      %v2985 = vld [vmem:[%s206 + $0x38] sm:$0xff]
      %v2986 = vld [vmem:[%s206 + $0x40] sm:$0xff]
      %v2987 = vld [vmem:[%s206 + $0x48] sm:$0xff]
      %v2988 = vld [vmem:[%s206 + $0x50] sm:$0xff]
      %v2989 = vld [vmem:[%s206 + $0x58] sm:$0xff]
      %v2990 = vld [vmem:[%s206 + $0x60] sm:$0xff]
      %v2991 = vld [vmem:[%s206 + $0x68] sm:$0xff]
      %v2992 = vld [vmem:[%s206 + $0x70] sm:$0xff]
      %v2993 = vld [vmem:[%s206 + $0x78] sm:$0xff]
      %v2994 = vld [vmem:[%s206 + $0x80] sm:$0xff]
      %v2995 = vld [vmem:[%s206 + $0x88] sm:$0xff]
      %v2996 = vld [vmem:[%s206 + $0x90] sm:$0xff]
      %v2997 = vld [vmem:[%s206 + $0x98] sm:$0xff]
      %v2998 = vld [vmem:[%s206 + $0xa0] sm:$0xff]
      %v2999 = vld [vmem:[%s206 + $0xa8] sm:$0xff]
      %v3000 = vld [vmem:[%s206 + $0xb0] sm:$0xff]
      %v3001 = vld [vmem:[%s206 + $0xb8] sm:$0xff]
      %v3002 = vld [vmem:[%s206 + $0xc0] sm:$0xff]
      %v3003 = vld [vmem:[%s206 + $0xc8] sm:$0xff]
      %v3004 = vld [vmem:[%s206 + $0xd0] sm:$0xff]
      %v3005 = vld [vmem:[%s206 + $0xd8] sm:$0xff]
      %v3006 = vld [vmem:[%s206 + $0xe0] sm:$0xff]
      %v3007 = vld [vmem:[%s206 + $0xe8] sm:$0xff]
      %v3008 = vld [vmem:[%s206 + $0xf0] sm:$0xff]
      %v3009 = vld [vmem:[%s206 + $0xf8] sm:$0xff]
      %v3010 = vmax.f32 %v2978, 0.0
      %v3011 = vmax.f32 %v2979, 0.0
      %v3012 = vmax.f32 %v2980, 0.0
      %v3013 = vmax.f32 %v2981, 0.0
      %v3014 = vmax.f32 %v2982, 0.0
      %v3015 = vmax.f32 %v2983, 0.0
      %v3016 = vmax.f32 %v2984, 0.0
      %v3017 = vmax.f32 %v2985, 0.0
      %v3018 = vmax.f32 %v2986, 0.0
      %v3019 = vmax.f32 %v2987, 0.0
      %v3020 = vmax.f32 %v2988, 0.0
      %v3021 = vmax.f32 %v2989, 0.0
      %v3022 = vmax.f32 %v2990, 0.0
      %v3023 = vmax.f32 %v2991, 0.0
      %v3024 = vmax.f32 %v2992, 0.0
      %v3025 = vmax.f32 %v2993, 0.0
      %v3026 = vmax.f32 %v2994, 0.0
      %v3027 = vmax.f32 %v2995, 0.0
      %v3028 = vmax.f32 %v2996, 0.0
      %v3029 = vmax.f32 %v2997, 0.0
      %v3030 = vmax.f32 %v2998, 0.0
      %v3031 = vmax.f32 %v2999, 0.0
      %v3032 = vmax.f32 %v3000, 0.0
      %v3033 = vmax.f32 %v3001, 0.0
      %v3034 = vmax.f32 %v3002, 0.0
      %v3035 = vmax.f32 %v3003, 0.0
      %v3036 = vmax.f32 %v3004, 0.0
      %v3037 = vmax.f32 %v3005, 0.0
      %v3038 = vmax.f32 %v3006, 0.0
      %v3039 = vmax.f32 %v3007, 0.0
      %v3040 = vmax.f32 %v3008, 0.0
      %v3041 = vmax.f32 %v3009, 0.0
      %3042 = vst [vmem:[%s206] sm:$0xff] %v3010
      %3043 = vst [vmem:[%s206 + $0x8] sm:$0xff] %v3011
      %3044 = vst [vmem:[%s206 + $0x10] sm:$0xff] %v3012
      %3045 = vst [vmem:[%s206 + $0x18] sm:$0xff] %v3013
      %3046 = vst [vmem:[%s206 + $0x20] sm:$0xff] %v3014
      %3047 = vst [vmem:[%s206 + $0x28] sm:$0xff] %v3015
      %3048 = vst [vmem:[%s206 + $0x30] sm:$0xff] %v3016
      %3049 = vst [vmem:[%s206 + $0x38] sm:$0xff] %v3017
      %3050 = vst [vmem:[%s206 + $0x40] sm:$0xff] %v3018
      %3051 = vst [vmem:[%s206 + $0x48] sm:$0xff] %v3019
      %3052 = vst [vmem:[%s206 + $0x50] sm:$0xff] %v3020
      %3053 = vst [vmem:[%s206 + $0x58] sm:$0xff] %v3021
      %3054 = vst [vmem:[%s206 + $0x60] sm:$0xff] %v3022
      %3055 = vst [vmem:[%s206 + $0x68] sm:$0xff] %v3023
      %3056 = vst [vmem:[%s206 + $0x70] sm:$0xff] %v3024
      %3057 = vst [vmem:[%s206 + $0x78] sm:$0xff] %v3025
      %3058 = vst [vmem:[%s206 + $0x80] sm:$0xff] %v3026
      %3059 = vst [vmem:[%s206 + $0x88] sm:$0xff] %v3027
      %3060 = vst [vmem:[%s206 + $0x90] sm:$0xff] %v3028
      %3061 = vst [vmem:[%s206 + $0x98] sm:$0xff] %v3029
      %3062 = vst [vmem:[%s206 + $0xa0] sm:$0xff] %v3030
      %3063 = vst [vmem:[%s206 + $0xa8] sm:$0xff] %v3031
      %3064 = vst [vmem:[%s206 + $0xb0] sm:$0xff] %v3032
      %3065 = vst [vmem:[%s206 + $0xb8] sm:$0xff] %v3033
      %3066 = vst [vmem:[%s206 + $0xc0] sm:$0xff] %v3034
      %3067 = vst [vmem:[%s206 + $0xc8] sm:$0xff] %v3035
      %3068 = vst [vmem:[%s206 + $0xd0] sm:$0xff] %v3036
      %3069 = vst [vmem:[%s206 + $0xd8] sm:$0xff] %v3037
      %3070 = vst [vmem:[%s206 + $0xe0] sm:$0xff] %v3038
      %3071 = vst [vmem:[%s206 + $0xe8] sm:$0xff] %v3039
      %3072 = vst [vmem:[%s206 + $0xf0] sm:$0xff] %v3040
      %3073 = vst [vmem:[%s206 + $0xf8] sm:$0xff] %v3041
      %p3074 = scmp.lt.s32.totalorder %s18, 1
      %s3075 = scalar_select %p3074, %s18, 1
      %p3076 = scmp.lt.s32.totalorder %s19, 0
      %s3077 = scalar_select %p3076, %s19, 0
      %s3078 = smul.addr %s3077, 32
      %s3079 = smul.addr %s3075, 32
      %s3080 = sadd.s32 %s3078, %s3079
      %s3081 = smul.addr %s3080, 8
      %s3082 = scalar_lea.vmem %s3, %s3081
      // Predicated region
      $region33: #{conv2d_block_forward.1} parent=31 // pred_check
        %p3083 = pneg %p116
      $region34: #{conv2d_block_forward.1} parent=31 // pred_check_branch
        %3085 = sbr.rel (%p3083) target = $region36
      $region35: #{conv2d_block_forward.1} parent=31 // pred_region
        _
      $region36: #{conv2d_block_forward.1} parent=31 // pred_fallthru
        _
    $region32: #{conv2d_block_forward.1} parent=5 // pred_fallthru
      _
    %p3086 = scmp.le.s32.totalorder 2, %s9
    // Predicated region
    $region37: #{conv2d_block_forward.1} parent=5 // pred_check
      %p3087 = pneg %p3086
    $region38: #{conv2d_block_forward.1} parent=5 // pred_check_branch
      %3089 = sbr.rel (%p3087) target = $region40
    $region39: #{conv2d_block_forward.1} parent=5 // pred_region
      %s3090 = ssub.s32 %s9, 2
      // Predicated region
      $region41: #{conv2d_block_forward.1} parent=39 // pred_check
        %p3091 = pneg %p122
      $region42: #{conv2d_block_forward.1} parent=39 // pred_check_branch
        %3093 = sbr.rel (%p3091) target = $region44
      $region43: #{conv2d_block_forward.1} parent=39 // pred_region
        %p3094 = scmp.lt.s32.totalorder %s20, 1
        %s3095 = scalar_select %p3094, %s20, 1
        %p3096 = scmp.lt.s32.totalorder %s21, 0
        %s3097 = scalar_select %p3096, %s21, 0
        %s3098 = smul.addr %s3097, 32
        %s3099 = smul.addr %s3095, 32
        %s3100 = sadd.s32 %s3098, %s3099
        %s3101 = smul.addr %s3100, 8
        %s3102 = scalar_lea.vmem %s3, %s3101
      $region44: #{conv2d_block_forward.1} parent=39 // pred_fallthru
        _
    $region40: #{conv2d_block_forward.1} parent=5 // pred_fallthru
      _
  $region6: #{conv2d_block_forward.1} parent=0 // loop_footer
    %s13 = sadd.s32 1, %s9
  $region7: #{conv2d_block_forward.1} parent=0 // loop_footer_branch
    %8 = sbr.rel target = $region3
  $region8: #{conv2d_block_forward.1} parent=0 // loop_exit
    _

</llo_original>
